<compile_context>
chip_gen: v5e
topology: v5e:2x2
jax: 0.10.0
libtpu: 0.0.40
codegen_flags: <defaults>
</compile_context>

<pallas_src>
import functools

import jax
import jax.numpy as jnp
import numpy as np
from jax.experimental import pallas as pl
from jax.experimental.pallas import tpu as pltpu


# --------------------------------------------------------------------------- #
# Kernel
# --------------------------------------------------------------------------- #
def _cat_dueling_kernel(x_ref, w1_ref, wh_ref, w2_ref, b_ref, o_ref, *,
                        num_actions, atoms, atoms_p, feat, hidden2):
    """One batch tile of the full forward pass (weights VMEM-resident)."""
    f32 = jnp.float32
    bf16 = jnp.bfloat16

    # Static 128-lane-aligned views of the packed bias operand.
    b1 = b_ref[:, 0:feat]                                           # (1, 128)
    bh = b_ref[:, feat:feat + hidden2]                              # (1, 1024)
    b2 = b_ref[:, feat + hidden2:feat + hidden2 + (num_actions + 1) * atoms_p]

    # body: Linear(obs_dim, 128) + ReLU
    x = x_ref[...]
    h = jnp.dot(x.astype(bf16), w1_ref[...], preferred_element_type=f32) + b1
    h = jnp.maximum(h, 0.0)

    # fused adv1|val1: one MXU pass -> (TB, 1024)
    u = jnp.dot(h.astype(bf16), wh_ref[...], preferred_element_type=f32) + bh
    u = jnp.maximum(u, 0.0)

    # fused block-diagonal adv2|val2: one MXU pass -> (TB, (A+1)*atoms_p)
    z = jnp.dot(u.astype(bf16), w2_ref[...], preferred_element_type=f32) + b2

    # value slab (last atoms_p lanes)
    val = z[:, num_actions * atoms_p:(num_actions + 1) * atoms_p]   # (TB, atoms_p)

    # mean over actions (per sample, per atom) -- static lane-aligned slices.
    adv_sum = z[:, 0:atoms_p]
    for a in range(1, num_actions):
        adv_sum = adv_sum + z[:, a * atoms_p:(a + 1) * atoms_p]
    adv_mean = adv_sum * (1.0 / num_actions)

    # mask padded atom lanes so they contribute 0 to the softmax.
    atom_idx = jax.lax.broadcasted_iota(jnp.int32, val.shape, 1)
    valid = atom_idx < atoms

    for a in range(num_actions):
        adv_a = z[:, a * atoms_p:(a + 1) * atoms_p]
        logits = val + adv_a - adv_mean
        logits = jnp.where(valid, logits, -1e30)
        m = jnp.max(logits, axis=-1, keepdims=True)
        e = jnp.exp(logits - m)
        s = jnp.sum(e, axis=-1, keepdims=True)
        o_ref[:, a, :] = (e / s).astype(o_ref.dtype)


# --------------------------------------------------------------------------- #
# Wrapper
# --------------------------------------------------------------------------- #
@functools.partial(jax.jit, static_argnames=("num_actions", "atoms"))
def categorical_dueling_dqn_forward(x, packed, *, num_actions, atoms):
    w1, wh, w2, b_all = packed
    obs_dim, feat = w1.shape
    hidden2 = wh.shape[1]
    atoms_p = w2.shape[1] // (num_actions + 1)

    B = x.shape[0]
    TB = B if B <= 128 else 128
    n_blocks = pl.cdiv(B, TB)
    Bp = n_blocks * TB
    if Bp != B:
        x = jnp.pad(x, ((0, Bp - B), (0, 0)))

    kernel = functools.partial(
        _cat_dueling_kernel, num_actions=num_actions, atoms=atoms,
        atoms_p=atoms_p, feat=feat, hidden2=hidden2)

    out = pl.pallas_call(
        kernel,
        out_shape=jax.ShapeDtypeStruct((Bp, num_actions, atoms_p), jnp.float32),
        grid=(n_blocks,),
        in_specs=[
            pl.BlockSpec((TB, obs_dim), lambda i: (i, 0)),       # x tiled on batch
            pl.BlockSpec((obs_dim, feat), lambda i: (0, 0)),     # weights resident
            pl.BlockSpec((feat, hidden2), lambda i: (0, 0)),
            pl.BlockSpec(w2.shape, lambda i: (0, 0)),
            pl.BlockSpec(b_all.shape, lambda i: (0, 0)),
        ],
        out_specs=pl.BlockSpec((TB, num_actions, atoms_p), lambda i: (i, 0, 0)),
        compiler_params=pltpu.CompilerParams(
            dimension_semantics=("parallel",)),
    )(x, w1, wh, w2, b_all)

    # drop batch padding and the padded atom lanes
    return out[:B, :, :atoms]


# --------------------------------------------------------------------------- #
# Parameters (torch nn.Linear-style init), packing, pure-JAX reference
# --------------------------------------------------------------------------- #
def _torch_linear_init(key, fan_in, fan_out):
    """U(-1/sqrt(fan_in), 1/sqrt(fan_in)); W pre-transposed (in, out) in bf16, b f32."""
    kw, kb = jax.random.split(key)
    bound = 1.0 / np.sqrt(fan_in)
    w_t = jax.random.uniform(kw, (fan_in, fan_out), jnp.float32, -bound, bound)
    b = jax.random.uniform(kb, (1, fan_out), jnp.float32, -bound, bound)
    return w_t.astype(jnp.bfloat16), b


def make_params(key, obs_dim, num_actions, atoms, hidden_body=128, hidden_head=512):
    keys = jax.random.split(key, 5)
    w1, b1 = _torch_linear_init(keys[0], obs_dim, hidden_body)                 # body.fc1
    wa1, ba1 = _torch_linear_init(keys[1], hidden_body, hidden_head)           # adv1
    wa2, ba2 = _torch_linear_init(keys[2], hidden_head, num_actions * atoms)   # adv2
    wv1, bv1 = _torch_linear_init(keys[3], hidden_body, hidden_head)           # val1
    wv2, bv2 = _torch_linear_init(keys[4], hidden_head, atoms)                 # val2
    return (w1, b1, wa1, ba1, wa2, ba2, wv1, bv1, wv2, bv2)


def pack_params(raw, num_actions, atoms):
    """Fuse/pad the head weights and pack all biases into one operand (done once)."""
    (w1, b1, wa1, ba1, wa2, ba2, wv1, bv1, wv2, bv2) = raw
    hid = wa1.shape[1]                                   # 512
    atoms_p = pl.cdiv(atoms, 128) * 128
    pad = atoms_p - atoms

    # fused adv1|val1
    wh = jnp.concatenate([wa1, wv1], axis=1)             # (128, 1024) bf16
    bh = jnp.concatenate([ba1, bv1], axis=1)             # (1, 1024)  f32

    # block-diagonal, atom-padded adv2|val2
    wa2_p = jnp.pad(wa2.astype(jnp.float32).reshape(hid, num_actions, atoms),
                    ((0, 0), (0, 0), (0, pad))).reshape(hid, num_actions * atoms_p)
    wv2_p = jnp.pad(wv2.astype(jnp.float32), ((0, 0), (0, pad)))     # (hid, atoms_p)
    w2 = jnp.zeros((2 * hid, (num_actions + 1) * atoms_p), jnp.float32)
    w2 = w2.at[:hid, :num_actions * atoms_p].set(wa2_p)
    w2 = w2.at[hid:, num_actions * atoms_p:].set(wv2_p)
    w2 = w2.astype(jnp.bfloat16)

    ba2_p = jnp.pad(ba2.reshape(num_actions, atoms),
                    ((0, 0), (0, pad))).reshape(1, num_actions * atoms_p)
    bv2_p = jnp.pad(bv2, ((0, 0), (0, pad)))
    b2 = jnp.concatenate([ba2_p, bv2_p], axis=1)         # (1, (A+1)*atoms_p)

    b_all = jnp.concatenate([b1, bh, b2], axis=1)        # single bias DMA
    return (w1, wh, w2, b_all)


def reference_forward(x, raw, num_actions, atoms):
    """Pure-JAX reference mirroring the PyTorch forward (same bf16/f32 policy)."""
    (w1, b1, wa1, ba1, wa2, ba2, wv1, bv1, wv2, bv2) = raw
    f32, bf16 = jnp.float32, jnp.bfloat16

    def lin(v, w, b):
        return jnp.dot(v.astype(bf16), w, preferred_element_type=f32) + b

    h = jax.nn.relu(lin(x, w1, b1))
    adv = lin(jax.nn.relu(lin(h, wa1, ba1)), wa2, ba2).reshape(-1, num_actions, atoms)
    val = lin(jax.nn.relu(lin(h, wv1, bv1)), wv2, bv2).reshape(-1, 1, atoms)
    final = val + adv - jnp.mean(adv, axis=1, keepdims=True)
    return jax.nn.softmax(final, axis=2)


# --------------------------------------------------------------------------- #
# Demo / self-check
# --------------------------------------------------------------------------- #
if __name__ == "__main__":
    key = jax.random.PRNGKey(0)
    k_x, k_p = jax.random.split(key)

    B = 8             # batch
    OBS_DIM = 16      # input_shape = (16,)
    NUM_ACTIONS = 4   # num_outputs
    ATOMS = 51        # module default

    x = jax.random.normal(k_x, (B, OBS_DIM), jnp.float32)
    raw_params = make_params(k_p, OBS_DIM, NUM_ACTIONS, ATOMS)
    packed = pack_params(raw_params, NUM_ACTIONS, ATOMS)

    probs = categorical_dueling_dqn_forward(
        x, packed, num_actions=NUM_ACTIONS, atoms=ATOMS)
    probs = jax.block_until_ready(probs)

    ref = reference_forward(x, raw_params, NUM_ACTIONS, ATOMS)
    np.testing.assert_allclose(np.asarray(probs), np.asarray(ref),
                               rtol=2e-3, atol=2e-5)
    assert probs.shape == (B, NUM_ACTIONS, ATOMS)
    # distributions over atoms must sum to 1
    np.testing.assert_allclose(np.asarray(probs.sum(-1)), 1.0, rtol=1e-4, atol=1e-4)

    print("KERNEL_OK")
</pallas_src>

<mosaic_0001>
module attributes {stable_mosaic.version = 11 : i64} {
  func.func @_cat_dueling_kernel(%arg0: i32, %arg1: memref<8x16xf32, #tpu.memory_space<vmem>>, %arg2: memref<16x128xbf16, #tpu.memory_space<vmem>>, %arg3: memref<128x1024xbf16, #tpu.memory_space<vmem>>, %arg4: memref<1024x640xbf16, #tpu.memory_space<vmem>>, %arg5: memref<1x1792xf32, #tpu.memory_space<vmem>>, %arg6: memref<8x4x128xf32, #tpu.memory_space<vmem>>) attributes {dimension_semantics = [#tpu.dimension_semantics<parallel>], iteration_bounds = array<i64: 1>, scalar_prefetch = 0 : i64, scratch_operands = 0 : i64, tpu.core_type = #tpu.core_type<tc>, window_params = [{transform_indices = @transform_0, window_bounds = array<i64: 8, 16>}, {pipeline_mode = #tpu.pipeline_mode<synchronous>, transform_indices = @transform_1, window_bounds = array<i64: 16, 128>}, {pipeline_mode = #tpu.pipeline_mode<synchronous>, transform_indices = @transform_2, window_bounds = array<i64: 128, 1024>}, {pipeline_mode = #tpu.pipeline_mode<synchronous>, transform_indices = @transform_3, window_bounds = array<i64: 1024, 640>}, {pipeline_mode = #tpu.pipeline_mode<synchronous>, transform_indices = @transform_4, window_bounds = array<i64: 1, 1792>}, {transform_indices = @transform_5, window_bounds = array<i64: 8, 4, 128>}]} {
    %c0 = arith.constant 0 : index
    %c0_0 = arith.constant 0 : index
    %0 = vector.load %arg5[%c0, %c0_0] : memref<1x1792xf32, #tpu.memory_space<vmem>>, vector<1x128xf32>
    %c0_1 = arith.constant 0 : index
    %c128 = arith.constant 128 : index
    %1 = vector.load %arg5[%c0_1, %c128] : memref<1x1792xf32, #tpu.memory_space<vmem>>, vector<1x1024xf32>
    %c0_2 = arith.constant 0 : index
    %c1152 = arith.constant 1152 : index
    %2 = vector.load %arg5[%c0_2, %c1152] : memref<1x1792xf32, #tpu.memory_space<vmem>>, vector<1x640xf32>
    %c0_3 = arith.constant 0 : index
    %c0_4 = arith.constant 0 : index
    %3 = vector.load %arg1[%c0_3, %c0_4] : memref<8x16xf32, #tpu.memory_space<vmem>>, vector<8x16xf32>
    %4 = arith.truncf %3 : vector<8x16xf32> to vector<8x16xbf16>
    %c0_5 = arith.constant 0 : index
    %c0_6 = arith.constant 0 : index
    %5 = vector.load %arg2[%c0_5, %c0_6] : memref<16x128xbf16, #tpu.memory_space<vmem>>, vector<16x128xbf16>
    %cst = arith.constant dense<0.000000e+00> : vector<8x128xf32>
    %6 = tpu.matmul %4, %5, %cst {dimension_numbers = #tpu.dot_dimension_numbers<[1], [0], [0], [1], [0, 0, 1, 1], [], []>} : vector<8x16xbf16>, vector<16x128xbf16>, vector<8x128xf32> -> vector<8x128xf32>
    %7 = vector.broadcast %0 : vector<1x128xf32> to vector<8x128xf32>
    %8 = arith.addf %6, %7 : vector<8x128xf32>
    %cst_7 = arith.constant 0.000000e+00 : f32
    %9 = vector.broadcast %cst_7 : f32 to vector<8x128xf32>
    %10 = arith.maximumf %8, %9 : vector<8x128xf32>
    %11 = arith.truncf %10 : vector<8x128xf32> to vector<8x128xbf16>
    %c0_8 = arith.constant 0 : index
    %c0_9 = arith.constant 0 : index
    %12 = vector.load %arg3[%c0_8, %c0_9] : memref<128x1024xbf16, #tpu.memory_space<vmem>>, vector<128x1024xbf16>
    %cst_10 = arith.constant dense<0.000000e+00> : vector<8x1024xf32>
    %13 = tpu.matmul %11, %12, %cst_10 {dimension_numbers = #tpu.dot_dimension_numbers<[1], [0], [0], [1], [0, 0, 1, 1], [], []>} : vector<8x128xbf16>, vector<128x1024xbf16>, vector<8x1024xf32> -> vector<8x1024xf32>
    %14 = vector.broadcast %1 : vector<1x1024xf32> to vector<8x1024xf32>
    %15 = arith.addf %13, %14 : vector<8x1024xf32>
    %cst_11 = arith.constant 0.000000e+00 : f32
    %16 = vector.broadcast %cst_11 : f32 to vector<8x1024xf32>
    %17 = arith.maximumf %15, %16 : vector<8x1024xf32>
    %18 = arith.truncf %17 : vector<8x1024xf32> to vector<8x1024xbf16>
    %c0_12 = arith.constant 0 : index
    %c0_13 = arith.constant 0 : index
    %19 = vector.load %arg4[%c0_12, %c0_13] : memref<1024x640xbf16, #tpu.memory_space<vmem>>, vector<1024x640xbf16>
    %cst_14 = arith.constant dense<0.000000e+00> : vector<8x640xf32>
    %20 = tpu.matmul %18, %19, %cst_14 {dimension_numbers = #tpu.dot_dimension_numbers<[1], [0], [0], [1], [0, 0, 1, 1], [], []>} : vector<8x1024xbf16>, vector<1024x640xbf16>, vector<8x640xf32> -> vector<8x640xf32>
    %21 = vector.broadcast %2 : vector<1x640xf32> to vector<8x640xf32>
    %22 = arith.addf %20, %21 : vector<8x640xf32>
    %23 = vector.extract_strided_slice %22 {offsets = [0, 512], sizes = [8, 128], strides = [1, 1]} : vector<8x640xf32> to vector<8x128xf32>
    %24 = vector.extract_strided_slice %22 {offsets = [0, 0], sizes = [8, 128], strides = [1, 1]} : vector<8x640xf32> to vector<8x128xf32>
    %25 = vector.extract_strided_slice %22 {offsets = [0, 128], sizes = [8, 128], strides = [1, 1]} : vector<8x640xf32> to vector<8x128xf32>
    %26 = arith.addf %24, %25 : vector<8x128xf32>
    %27 = vector.extract_strided_slice %22 {offsets = [0, 256], sizes = [8, 128], strides = [1, 1]} : vector<8x640xf32> to vector<8x128xf32>
    %28 = arith.addf %26, %27 : vector<8x128xf32>
    %29 = vector.extract_strided_slice %22 {offsets = [0, 384], sizes = [8, 128], strides = [1, 1]} : vector<8x640xf32> to vector<8x128xf32>
    %30 = arith.addf %28, %29 : vector<8x128xf32>
    %cst_15 = arith.constant 2.500000e-01 : f32
    %31 = vector.broadcast %cst_15 : f32 to vector<8x128xf32>
    %32 = arith.mulf %30, %31 : vector<8x128xf32>
    %33 = tpu.iota {dimensions = array<i32: 1>} : vector<8x128xi32>
    %c51_i32 = arith.constant 51 : i32
    %34 = vector.broadcast %c51_i32 : i32 to vector<8x128xi32>
    %35 = arith.cmpi slt, %33, %34 : vector<8x128xi32>
    %36 = vector.extract_strided_slice %22 {offsets = [0, 0], sizes = [8, 128], strides = [1, 1]} : vector<8x640xf32> to vector<8x128xf32>
    %37 = arith.addf %23, %36 : vector<8x128xf32>
    %38 = arith.subf %37, %32 : vector<8x128xf32>
    %cst_16 = arith.constant -1.000000e+30 : f32
    %39 = vector.broadcast %cst_16 : f32 to vector<8x128xf32>
    %40 = arith.select %35, %38, %39 : vector<8x128xi1>, vector<8x128xf32>
    %cst_17 = arith.constant dense<0xFF800000> : vector<8xf32>
    %41 = vector.multi_reduction <maximumf>, %40, %cst_17 [1] : vector<8x128xf32> to vector<8xf32>
    %42 = vector.shape_cast %41 : vector<8xf32> to vector<8x1xf32>
    %43 = vector.broadcast %42 : vector<8x1xf32> to vector<8x128xf32>
    %44 = arith.subf %40, %43 : vector<8x128xf32>
    %45 = math.exp %44 : vector<8x128xf32>
    %cst_18 = arith.constant dense<0.000000e+00> : vector<8xf32>
    %46 = vector.multi_reduction <add>, %45, %cst_18 [1] : vector<8x128xf32> to vector<8xf32>
    %47 = vector.shape_cast %46 : vector<8xf32> to vector<8x1xf32>
    %48 = vector.broadcast %47 : vector<8x1xf32> to vector<8x128xf32>
    %49 = arith.divf %45, %48 : vector<8x128xf32>
    %c0_19 = arith.constant 0 : index
    %c0_20 = arith.constant 0 : index
    %c0_21 = arith.constant 0 : index
    %50 = vector.load %arg6[%c0_19, %c0_20, %c0_21] : memref<8x4x128xf32, #tpu.memory_space<vmem>>, vector<8x1x128xf32>
    %51 = vector.shape_cast %50 : vector<8x1x128xf32> to vector<8x128xf32>
    %52 = vector.shape_cast %49 : vector<8x128xf32> to vector<8x1x128xf32>
    tpu.vector_store %arg6[%c0_19, %c0_20, %c0_21], %52 {strides = array<i32>} : memref<8x4x128xf32, #tpu.memory_space<vmem>>, vector<8x1x128xf32>,
    %53 = vector.extract_strided_slice %22 {offsets = [0, 128], sizes = [8, 128], strides = [1, 1]} : vector<8x640xf32> to vector<8x128xf32>
    %54 = arith.addf %23, %53 : vector<8x128xf32>
    %55 = arith.subf %54, %32 : vector<8x128xf32>
    %cst_22 = arith.constant -1.000000e+30 : f32
    %56 = vector.broadcast %cst_22 : f32 to vector<8x128xf32>
    %57 = arith.select %35, %55, %56 : vector<8x128xi1>, vector<8x128xf32>
    %cst_23 = arith.constant dense<0xFF800000> : vector<8xf32>
    %58 = vector.multi_reduction <maximumf>, %57, %cst_23 [1] : vector<8x128xf32> to vector<8xf32>
    %59 = vector.shape_cast %58 : vector<8xf32> to vector<8x1xf32>
    %60 = vector.broadcast %59 : vector<8x1xf32> to vector<8x128xf32>
    %61 = arith.subf %57, %60 : vector<8x128xf32>
    %62 = math.exp %61 : vector<8x128xf32>
    %cst_24 = arith.constant dense<0.000000e+00> : vector<8xf32>
    %63 = vector.multi_reduction <add>, %62, %cst_24 [1] : vector<8x128xf32> to vector<8xf32>
    %64 = vector.shape_cast %63 : vector<8xf32> to vector<8x1xf32>
    %65 = vector.broadcast %64 : vector<8x1xf32> to vector<8x128xf32>
    %66 = arith.divf %62, %65 : vector<8x128xf32>
    %c0_25 = arith.constant 0 : index
    %c1 = arith.constant 1 : index
    %c0_26 = arith.constant 0 : index
    %67 = vector.load %arg6[%c0_25, %c1, %c0_26] : memref<8x4x128xf32, #tpu.memory_space<vmem>>, vector<8x1x128xf32>
    %68 = vector.shape_cast %67 : vector<8x1x128xf32> to vector<8x128xf32>
    %69 = vector.shape_cast %66 : vector<8x128xf32> to vector<8x1x128xf32>
    tpu.vector_store %arg6[%c0_25, %c1, %c0_26], %69 {strides = array<i32>} : memref<8x4x128xf32, #tpu.memory_space<vmem>>, vector<8x1x128xf32>,
    %70 = vector.extract_strided_slice %22 {offsets = [0, 256], sizes = [8, 128], strides = [1, 1]} : vector<8x640xf32> to vector<8x128xf32>
    %71 = arith.addf %23, %70 : vector<8x128xf32>
    %72 = arith.subf %71, %32 : vector<8x128xf32>
    %cst_27 = arith.constant -1.000000e+30 : f32
    %73 = vector.broadcast %cst_27 : f32 to vector<8x128xf32>
    %74 = arith.select %35, %72, %73 : vector<8x128xi1>, vector<8x128xf32>
    %cst_28 = arith.constant dense<0xFF800000> : vector<8xf32>
    %75 = vector.multi_reduction <maximumf>, %74, %cst_28 [1] : vector<8x128xf32> to vector<8xf32>
    %76 = vector.shape_cast %75 : vector<8xf32> to vector<8x1xf32>
    %77 = vector.broadcast %76 : vector<8x1xf32> to vector<8x128xf32>
    %78 = arith.subf %74, %77 : vector<8x128xf32>
    %79 = math.exp %78 : vector<8x128xf32>
    %cst_29 = arith.constant dense<0.000000e+00> : vector<8xf32>
    %80 = vector.multi_reduction <add>, %79, %cst_29 [1] : vector<8x128xf32> to vector<8xf32>
    %81 = vector.shape_cast %80 : vector<8xf32> to vector<8x1xf32>
    %82 = vector.broadcast %81 : vector<8x1xf32> to vector<8x128xf32>
    %83 = arith.divf %79, %82 : vector<8x128xf32>
    %c0_30 = arith.constant 0 : index
    %c2 = arith.constant 2 : index
    %c0_31 = arith.constant 0 : index
    %84 = vector.load %arg6[%c0_30, %c2, %c0_31] : memref<8x4x128xf32, #tpu.memory_space<vmem>>, vector<8x1x128xf32>
    %85 = vector.shape_cast %84 : vector<8x1x128xf32> to vector<8x128xf32>
    %86 = vector.shape_cast %83 : vector<8x128xf32> to vector<8x1x128xf32>
    tpu.vector_store %arg6[%c0_30, %c2, %c0_31], %86 {strides = array<i32>} : memref<8x4x128xf32, #tpu.memory_space<vmem>>, vector<8x1x128xf32>,
    %87 = vector.extract_strided_slice %22 {offsets = [0, 384], sizes = [8, 128], strides = [1, 1]} : vector<8x640xf32> to vector<8x128xf32>
    %88 = arith.addf %23, %87 : vector<8x128xf32>
    %89 = arith.subf %88, %32 : vector<8x128xf32>
    %cst_32 = arith.constant -1.000000e+30 : f32
    %90 = vector.broadcast %cst_32 : f32 to vector<8x128xf32>
    %91 = arith.select %35, %89, %90 : vector<8x128xi1>, vector<8x128xf32>
    %cst_33 = arith.constant dense<0xFF800000> : vector<8xf32>
    %92 = vector.multi_reduction <maximumf>, %91, %cst_33 [1] : vector<8x128xf32> to vector<8xf32>
    %93 = vector.shape_cast %92 : vector<8xf32> to vector<8x1xf32>
    %94 = vector.broadcast %93 : vector<8x1xf32> to vector<8x128xf32>
    %95 = arith.subf %91, %94 : vector<8x128xf32>
    %96 = math.exp %95 : vector<8x128xf32>
    %cst_34 = arith.constant dense<0.000000e+00> : vector<8xf32>
    %97 = vector.multi_reduction <add>, %96, %cst_34 [1] : vector<8x128xf32> to vector<8xf32>
    %98 = vector.shape_cast %97 : vector<8xf32> to vector<8x1xf32>
    %99 = vector.broadcast %98 : vector<8x1xf32> to vector<8x128xf32>
    %100 = arith.divf %96, %99 : vector<8x128xf32>
    %c0_35 = arith.constant 0 : index
    %c3 = arith.constant 3 : index
    %c0_36 = arith.constant 0 : index
    %101 = vector.load %arg6[%c0_35, %c3, %c0_36] : memref<8x4x128xf32, #tpu.memory_space<vmem>>, vector<8x1x128xf32>
    %102 = vector.shape_cast %101 : vector<8x1x128xf32> to vector<8x128xf32>
    %103 = vector.shape_cast %100 : vector<8x128xf32> to vector<8x1x128xf32>
    tpu.vector_store %arg6[%c0_35, %c3, %c0_36], %103 {strides = array<i32>} : memref<8x4x128xf32, #tpu.memory_space<vmem>>, vector<8x1x128xf32>,
    return
  }
  func.func @transform_0(%arg0: i32) -> (i32, i32) {
    %c0_i32 = arith.constant 0 : i32
    %c0_i32_0 = arith.constant 0 : i32
    return %arg0, %c0_i32 : i32, i32
  }
  func.func @transform_1(%arg0: i32) -> (i32, i32) {
    %c0_i32 = arith.constant 0 : i32
    %c0_i32_0 = arith.constant 0 : i32
    %c0_i32_1 = arith.constant 0 : i32
    return %c0_i32, %c0_i32_0 : i32, i32
  }
  func.func @transform_2(%arg0: i32) -> (i32, i32) {
    %c0_i32 = arith.constant 0 : i32
    %c0_i32_0 = arith.constant 0 : i32
    %c0_i32_1 = arith.constant 0 : i32
    return %c0_i32, %c0_i32_0 : i32, i32
  }
  func.func @transform_3(%arg0: i32) -> (i32, i32) {
    %c0_i32 = arith.constant 0 : i32
    %c0_i32_0 = arith.constant 0 : i32
    %c0_i32_1 = arith.constant 0 : i32
    return %c0_i32, %c0_i32_0 : i32, i32
  }
  func.func @transform_4(%arg0: i32) -> (i32, i32) {
    %c0_i32 = arith.constant 0 : i32
    %c0_i32_0 = arith.constant 0 : i32
    %c0_i32_1 = arith.constant 0 : i32
    return %c0_i32, %c0_i32_0 : i32, i32
  }
  func.func @transform_5(%arg0: i32) -> (i32, i32, i32) {
    %c0_i32 = arith.constant 0 : i32
    %c0_i32_0 = arith.constant 0 : i32
    %c0_i32_1 = arith.constant 0 : i32
    return %arg0, %c0_i32, %c0_i32_0 : i32, i32, i32
  }
}

</mosaic_0001>

<llo_original>
// kernel: categorical_dueling_dqn_forward.1
$region0: #{categorical_dueling_dqn_forward.1}
  #allocation0 [shape = 'u32[]', space=smem, size = 0x4, offset = 0x4, fixed_abs, tag = 'smem constant byte address 0x4 - core index']
  #allocation1 [shape = 'u32[72,128]{1,0:T(1,128)}', space=vmem, size = 0x9000, scoped, tag = 'internal scratch']
  %s0 = inlined_call_operand.hbm [shape: f32[8,16], index: 0, kind: input, shape index: {}]
  %s1 = inlined_call_operand.hbm [shape: bf16[16,128], index: 1, kind: input, shape index: {}]
  %s2 = inlined_call_operand.hbm [shape: bf16[128,1024], index: 2, kind: input, shape index: {}]
  %s3 = inlined_call_operand.hbm [shape: bf16[1024,640], index: 3, kind: input, shape index: {}]
  %s4 = inlined_call_operand.hbm [shape: f32[1,1792], index: 4, kind: input, shape index: {}]
  %s5 = inlined_call_operand.hbm [shape: f32[8,4,128], index: 5, kind: output, shape index: {}]
  %s6 = sld [smem:[#allocation0]]
  $region50: #{categorical_dueling_dqn_forward.1} parent=0
    _
  %s8 = ssub.s32 1, %s6
  %s9 = scalar_select 0, %s8, %s6
  $region1: #{categorical_dueling_dqn_forward.1} parent=0
    #allocation2 [shape = 'u8[4096]{0}', space=vmem, size = 0x1000, scoped, tag = 'input window, operand 0, single buffered']
    #allocation3 [shape = 's32[1]{0}', space=sflag, size = 0x4, scoped, tag = 'scoped memory for categorical_dueling_dqn_forward.1']
    #allocation4 [shape = 's32[1]{0}', space=sflag, size = 0x4, scoped, tag = 'scoped memory for categorical_dueling_dqn_forward.1']
    #allocation5 [shape = 'u8[4096]{0}', space=vmem, size = 0x1000, scoped, tag = 'input window, operand 1, single buffered']
    #allocation6 [shape = 's32[1]{0}', space=sflag, size = 0x4, scoped, tag = 'scoped memory for categorical_dueling_dqn_forward.1']
    #allocation7 [shape = 'u8[262144]{0}', space=vmem, size = 0x40000, scoped, tag = 'input window, operand 2, single buffered']
    #allocation8 [shape = 'u8[1310720]{0}', space=vmem, size = 0x140000, scoped, tag = 'input window, operand 3, single buffered']
    #allocation9 [shape = 's32[1]{0}', space=sflag, size = 0x4, scoped, tag = 'scoped memory for categorical_dueling_dqn_forward.1']
    #allocation10 [shape = 'u8[7168]{0}', space=vmem, size = 0x1c00, scoped, tag = 'input window, operand 4, single buffered']
    #allocation11 [shape = 'u8[16384]{0}', space=vmem, size = 0x4000, scoped, tag = 'output window, operand 0, single buffered']
    %10 = vsyncpa [#allocation3], 0
    %11 = vsyncpa [#allocation6], 0
    %12 = vsyncpa [#allocation9], 0
    %13 = vsyncpa [#allocation4], 0
    // Predicated region
    $region2: #{categorical_dueling_dqn_forward.1} parent=1 // pred_check
      _
    $region3: #{categorical_dueling_dqn_forward.1} parent=1 // pred_check_branch
      %15 = sbr.rel (0) target = $region5
    $region4: #{categorical_dueling_dqn_forward.1} parent=1 // pred_region
      %17 = vsyncadd [#allocation3], 0
      %s19 = sshll.u32 %s0, 4
      %s20 = int_to_ptr.hbm [resolvable:$true] %s19
      %s21 = sshll.u32 [#allocation2], 4
      %s22 = int_to_ptr.vmem [resolvable:$true] %s21
      %24 = dma.hbm_to_vmem [thread:$0]  %s20, 128, %s22, [#allocation3]
    $region5: #{categorical_dueling_dqn_forward.1} parent=1 // pred_fallthru
      _
    // Predicated region
    $region6: #{categorical_dueling_dqn_forward.1} parent=1 // pred_check
      _
    $region7: #{categorical_dueling_dqn_forward.1} parent=1 // pred_check_branch
      %26 = sbr.rel (0) target = $region9
    $region8: #{categorical_dueling_dqn_forward.1} parent=1 // pred_region
      %28 = vsyncadd [#allocation6], 0
      %s29 = sshll.u32 %s1, 4
      %s30 = int_to_ptr.hbm [resolvable:$true] %s29
      %s31 = sshll.u32 [#allocation5], 4
      %s32 = int_to_ptr.vmem [resolvable:$true] %s31
      %37 = dma.hbm_to_vmem [thread:$0]  %s30, 128, %s32, [#allocation6], 64, 64, 4
    $region9: #{categorical_dueling_dqn_forward.1} parent=1 // pred_fallthru
      _
    // Predicated region
    $region10: #{categorical_dueling_dqn_forward.1} parent=1 // pred_check
      _
    $region11: #{categorical_dueling_dqn_forward.1} parent=1 // pred_check_branch
      %39 = sbr.rel (0) target = $region13
    $region12: #{categorical_dueling_dqn_forward.1} parent=1 // pred_region
      %41 = vsyncadd [#allocation6], 0
      %s42 = sshll.u32 %s2, 4
      %s43 = int_to_ptr.hbm [resolvable:$true] %s42
      %s44 = sshll.u32 [#allocation7], 4
      %s45 = int_to_ptr.vmem [resolvable:$true] %s44
      %50 = dma.hbm_to_vmem [thread:$0]  %s43, 8192, %s45, [#allocation6], 512, 512, 32
    $region13: #{categorical_dueling_dqn_forward.1} parent=1 // pred_fallthru
      _
    // Predicated region
    $region14: #{categorical_dueling_dqn_forward.1} parent=1 // pred_check
      _
    $region15: #{categorical_dueling_dqn_forward.1} parent=1 // pred_check_branch
      %52 = sbr.rel (0) target = $region17
    $region16: #{categorical_dueling_dqn_forward.1} parent=1 // pred_region
      %54 = vsyncadd [#allocation9], 0
      %s55 = sshll.u32 %s3, 4
      %s56 = int_to_ptr.hbm [resolvable:$true] %s55
      %s57 = sshll.u32 [#allocation8], 4
      %s58 = int_to_ptr.vmem [resolvable:$true] %s57
      %63 = dma.hbm_to_vmem [thread:$0]  %s56, 40960, %s58, [#allocation9], 320, 320, 20
    $region17: #{categorical_dueling_dqn_forward.1} parent=1 // pred_fallthru
      _
    // Predicated region
    $region18: #{categorical_dueling_dqn_forward.1} parent=1 // pred_check
      _
    $region19: #{categorical_dueling_dqn_forward.1} parent=1 // pred_check_branch
      %65 = sbr.rel (0) target = $region21
    $region20: #{categorical_dueling_dqn_forward.1} parent=1 // pred_region
      %67 = vsyncadd [#allocation9], 0
      %s69 = sshll.u32 %s4, 4
      %s70 = int_to_ptr.hbm [resolvable:$true] %s69
      %s71 = sshll.u32 [#allocation10], 4
      %s72 = int_to_ptr.vmem [resolvable:$true] %s71
      %74 = dma.hbm_to_vmem [thread:$0]  %s70, 224, %s72, [#allocation9]
    $region21: #{categorical_dueling_dqn_forward.1} parent=1 // pred_fallthru
      _
    // Predicated region
    $region22: #{categorical_dueling_dqn_forward.1} parent=1 // pred_check
      _
    $region23: #{categorical_dueling_dqn_forward.1} parent=1 // pred_check_branch
      %76 = sbr.rel (0) target = $region25
    $region24: #{categorical_dueling_dqn_forward.1} parent=1 // pred_region
      %78 = dma.done [#allocation3], 128
    $region25: #{categorical_dueling_dqn_forward.1} parent=1 // pred_fallthru
      _
    // Predicated region
    $region26: #{categorical_dueling_dqn_forward.1} parent=1 // pred_check
      _
    $region27: #{categorical_dueling_dqn_forward.1} parent=1 // pred_check_branch
      %80 = sbr.rel (0) target = $region29
    $region28: #{categorical_dueling_dqn_forward.1} parent=1 // pred_region
      %82 = dma.done [#allocation6], 128
    $region29: #{categorical_dueling_dqn_forward.1} parent=1 // pred_fallthru
      _
    // Predicated region
    $region30: #{categorical_dueling_dqn_forward.1} parent=1 // pred_check
      _
    $region31: #{categorical_dueling_dqn_forward.1} parent=1 // pred_check_branch
      %84 = sbr.rel (0) target = $region33
    $region32: #{categorical_dueling_dqn_forward.1} parent=1 // pred_region
      %86 = dma.done [#allocation6], 8192
    $region33: #{categorical_dueling_dqn_forward.1} parent=1 // pred_fallthru
      _
    // Predicated region
    $region34: #{categorical_dueling_dqn_forward.1} parent=1 // pred_check
      _
    $region35: #{categorical_dueling_dqn_forward.1} parent=1 // pred_check_branch
      %88 = sbr.rel (0) target = $region37
    $region36: #{categorical_dueling_dqn_forward.1} parent=1 // pred_region
      %90 = dma.done [#allocation9], 40960
    $region37: #{categorical_dueling_dqn_forward.1} parent=1 // pred_fallthru
      _
    // Predicated region
    $region38: #{categorical_dueling_dqn_forward.1} parent=1 // pred_check
      _
    $region39: #{categorical_dueling_dqn_forward.1} parent=1 // pred_check_branch
      %92 = sbr.rel (0) target = $region41
    $region40: #{categorical_dueling_dqn_forward.1} parent=1 // pred_region
      %94 = dma.done [#allocation9], 224
    $region41: #{categorical_dueling_dqn_forward.1} parent=1 // pred_fallthru
      _
    %v96 = vld [vmem:[#allocation10] sm:$0x1]
    %v97 = vld [vmem:[#allocation10 + $0x1] sm:$0xff]
    %v98 = vld [vmem:[#allocation10 + $0x9] sm:$0x1f]
    %v99 = vld [vmem:[#allocation2] sm:$0xff]
    %v100 = vpack.c.bf16 %v99, %v99
    %v101 = vld [vmem:[#allocation5] sm:$0xf]
    %v102 = vld [vmem:[#allocation5 + $0x4] sm:$0xf]
    %v104 = vperm.slane %v96, 0
    %v108 = vunpack.c.l.b16 %v101
    %v109 = vunpack.c.l.b16 %v102
    %v110 = vpack.c.b16 %v109, %v108
    %vm112 = vcmask 130048
    %v114 = vsel %vm112, %v100, 0
    %116 = vmatpush.bf16.msra.mxu0 0
    %117 = vmatpush.bf16.msra.mxu0 0
    %118 = vmatpush.bf16.msra.mxu0 0
    %119 = vmatpush.bf16.msra.mxu0 0
    %120 = vmatpush.bf16.msra.mxu0 0
    %121 = vmatpush.bf16.msra.mxu0 0
    %122 = vmatpush.bf16.msra.mxu0 0
    %123 = vmatpush.bf16.msra.mxu0 %v110
    %124 = vmatmul.bf16.gmra.mxu0 %v114
    %v125 = vpop.f32.mrf.mxu0
    %v126 = vadd.f32 %v104, %v125
    %v127 = vpop.f32.mrf.mxu0
    %128 = vdwg.mxu0
    %v129 = vmax.f32 %v126, 0.0
    %v130 = vpack.c.bf16 %v129, %v129
    %v131 = vld [vmem:[#allocation7] sm:$0xff]
    %v132 = vld [vmem:[#allocation7 + $0x8] sm:$0xff]
    %v133 = vld [vmem:[#allocation7 + $0x10] sm:$0xff]
    %v134 = vld [vmem:[#allocation7 + $0x18] sm:$0xff]
    %v135 = vld [vmem:[#allocation7 + $0x20] sm:$0xff]
    %v136 = vld [vmem:[#allocation7 + $0x28] sm:$0xff]
    %v137 = vld [vmem:[#allocation7 + $0x30] sm:$0xff]
    %v138 = vld [vmem:[#allocation7 + $0x38] sm:$0xff]
    %v139 = vld [vmem:[#allocation7 + $0x40] sm:$0xff]
    %v140 = vld [vmem:[#allocation7 + $0x48] sm:$0xff]
    %v141 = vld [vmem:[#allocation7 + $0x50] sm:$0xff]
    %v142 = vld [vmem:[#allocation7 + $0x58] sm:$0xff]
    %v143 = vld [vmem:[#allocation7 + $0x60] sm:$0xff]
    %v144 = vld [vmem:[#allocation7 + $0x68] sm:$0xff]
    %v145 = vld [vmem:[#allocation7 + $0x70] sm:$0xff]
    %v146 = vld [vmem:[#allocation7 + $0x78] sm:$0xff]
    %v147 = vld [vmem:[#allocation7 + $0x80] sm:$0xff]
    %v148 = vld [vmem:[#allocation7 + $0x88] sm:$0xff]
    %v149 = vld [vmem:[#allocation7 + $0x90] sm:$0xff]
    %v150 = vld [vmem:[#allocation7 + $0x98] sm:$0xff]
    %v151 = vld [vmem:[#allocation7 + $0xa0] sm:$0xff]
    %v152 = vld [vmem:[#allocation7 + $0xa8] sm:$0xff]
    %v153 = vld [vmem:[#allocation7 + $0xb0] sm:$0xff]
    %v154 = vld [vmem:[#allocation7 + $0xb8] sm:$0xff]
    %v155 = vld [vmem:[#allocation7 + $0xc0] sm:$0xff]
    %v156 = vld [vmem:[#allocation7 + $0xc8] sm:$0xff]
    %v157 = vld [vmem:[#allocation7 + $0xd0] sm:$0xff]
    %v158 = vld [vmem:[#allocation7 + $0xd8] sm:$0xff]
    %v159 = vld [vmem:[#allocation7 + $0xe0] sm:$0xff]
    %v160 = vld [vmem:[#allocation7 + $0xe8] sm:$0xff]
    %v161 = vld [vmem:[#allocation7 + $0xf0] sm:$0xff]
    %v162 = vld [vmem:[#allocation7 + $0xf8] sm:$0xff]
    %v163 = vld [vmem:[#allocation7 + $0x100] sm:$0xff]
    %v164 = vld [vmem:[#allocation7 + $0x108] sm:$0xff]
    %v165 = vld [vmem:[#allocation7 + $0x110] sm:$0xff]
    %v166 = vld [vmem:[#allocation7 + $0x118] sm:$0xff]
    %v167 = vld [vmem:[#allocation7 + $0x120] sm:$0xff]
    %v168 = vld [vmem:[#allocation7 + $0x128] sm:$0xff]
    %v169 = vld [vmem:[#allocation7 + $0x130] sm:$0xff]
    %v170 = vld [vmem:[#allocation7 + $0x138] sm:$0xff]
    %v171 = vld [vmem:[#allocation7 + $0x140] sm:$0xff]
    %v172 = vld [vmem:[#allocation7 + $0x148] sm:$0xff]
    %v173 = vld [vmem:[#allocation7 + $0x150] sm:$0xff]
    %v174 = vld [vmem:[#allocation7 + $0x158] sm:$0xff]
    %v175 = vld [vmem:[#allocation7 + $0x160] sm:$0xff]
    %v176 = vld [vmem:[#allocation7 + $0x168] sm:$0xff]
    %v177 = vld [vmem:[#allocation7 + $0x170] sm:$0xff]
    %v178 = vld [vmem:[#allocation7 + $0x178] sm:$0xff]
    %v179 = vld [vmem:[#allocation7 + $0x180] sm:$0xff]
    %v180 = vld [vmem:[#allocation7 + $0x188] sm:$0xff]
    %v181 = vld [vmem:[#allocation7 + $0x190] sm:$0xff]
    %v182 = vld [vmem:[#allocation7 + $0x198] sm:$0xff]
    %v183 = vld [vmem:[#allocation7 + $0x1a0] sm:$0xff]
    %v184 = vld [vmem:[#allocation7 + $0x1a8] sm:$0xff]
    %v185 = vld [vmem:[#allocation7 + $0x1b0] sm:$0xff]
    %v186 = vld [vmem:[#allocation7 + $0x1b8] sm:$0xff]
    %v187 = vld [vmem:[#allocation7 + $0x1c0] sm:$0xff]
    %v188 = vld [vmem:[#allocation7 + $0x1c8] sm:$0xff]
    %v189 = vld [vmem:[#allocation7 + $0x1d0] sm:$0xff]
    %v190 = vld [vmem:[#allocation7 + $0x1d8] sm:$0xff]
    %v191 = vld [vmem:[#allocation7 + $0x1e0] sm:$0xff]
    %v192 = vld [vmem:[#allocation7 + $0x1e8] sm:$0xff]
    %v193 = vld [vmem:[#allocation7 + $0x1f0] sm:$0xff]
    %v194 = vld [vmem:[#allocation7 + $0x1f8] sm:$0xff]
    %v196 = vperm.slane %v97, 0
    %v197 = vperm.slane %v97, 1
    %v198 = vperm.slane %v97, 2
    %v199 = vperm.slane %v97, 3
    %v200 = vperm.slane %v97, 4
    %v201 = vperm.slane %v97, 5
    %v202 = vperm.slane %v97, 6
    %v203 = vperm.slane %v97, 7
    %v276 = vunpack.c.l.b16 %v131
    %v277 = vunpack.c.h.b16 %v131
    %v278 = vunpack.c.l.b16 %v132
    %v279 = vunpack.c.h.b16 %v132
    %v280 = vunpack.c.l.b16 %v133
    %v281 = vunpack.c.h.b16 %v133
    %v282 = vunpack.c.l.b16 %v134
    %v283 = vunpack.c.h.b16 %v134
    %v284 = vunpack.c.l.b16 %v135
    %v285 = vunpack.c.h.b16 %v135
    %v286 = vunpack.c.l.b16 %v136
    %v287 = vunpack.c.h.b16 %v136
    %v288 = vunpack.c.l.b16 %v137
    %v289 = vunpack.c.h.b16 %v137
    %v290 = vunpack.c.l.b16 %v138
    %v291 = vunpack.c.h.b16 %v138
    %v292 = vunpack.c.l.b16 %v139
    %v293 = vunpack.c.h.b16 %v139
    %v294 = vunpack.c.l.b16 %v140
    %v295 = vunpack.c.h.b16 %v140
    %v296 = vunpack.c.l.b16 %v141
    %v297 = vunpack.c.h.b16 %v141
    %v298 = vunpack.c.l.b16 %v142
    %v299 = vunpack.c.h.b16 %v142
    %v300 = vunpack.c.l.b16 %v143
    %v301 = vunpack.c.h.b16 %v143
    %v302 = vunpack.c.l.b16 %v144
    %v303 = vunpack.c.h.b16 %v144
    %v304 = vunpack.c.l.b16 %v145
    %v305 = vunpack.c.h.b16 %v145
    %v306 = vunpack.c.l.b16 %v146
    %v307 = vunpack.c.h.b16 %v146
    %v308 = vunpack.c.l.b16 %v147
    %v309 = vunpack.c.h.b16 %v147
    %v310 = vunpack.c.l.b16 %v148
    %v311 = vunpack.c.h.b16 %v148
    %v312 = vunpack.c.l.b16 %v149
    %v313 = vunpack.c.h.b16 %v149
    %v314 = vunpack.c.l.b16 %v150
    %v315 = vunpack.c.h.b16 %v150
    %v316 = vunpack.c.l.b16 %v151
    %v317 = vunpack.c.h.b16 %v151
    %v318 = vunpack.c.l.b16 %v152
    %v319 = vunpack.c.h.b16 %v152
    %v320 = vunpack.c.l.b16 %v153
    %v321 = vunpack.c.h.b16 %v153
    %v322 = vunpack.c.l.b16 %v154
    %v323 = vunpack.c.h.b16 %v154
    %v324 = vunpack.c.l.b16 %v155
    %v325 = vunpack.c.h.b16 %v155
    %v326 = vunpack.c.l.b16 %v156
    %v327 = vunpack.c.h.b16 %v156
    %v328 = vunpack.c.l.b16 %v157
    %v329 = vunpack.c.h.b16 %v157
    %v330 = vunpack.c.l.b16 %v158
    %v331 = vunpack.c.h.b16 %v158
    %v332 = vunpack.c.l.b16 %v159
    %v333 = vunpack.c.h.b16 %v159
    %v334 = vunpack.c.l.b16 %v160
    %v335 = vunpack.c.h.b16 %v160
    %v336 = vunpack.c.l.b16 %v161
    %v337 = vunpack.c.h.b16 %v161
    %v338 = vunpack.c.l.b16 %v162
    %v339 = vunpack.c.h.b16 %v162
    %v340 = vunpack.c.l.b16 %v163
    %v341 = vunpack.c.h.b16 %v163
    %v342 = vunpack.c.l.b16 %v164
    %v343 = vunpack.c.h.b16 %v164
    %v344 = vunpack.c.l.b16 %v165
    %v345 = vunpack.c.h.b16 %v165
    %v346 = vunpack.c.l.b16 %v166
    %v347 = vunpack.c.h.b16 %v166
    %v348 = vunpack.c.l.b16 %v167
    %v349 = vunpack.c.h.b16 %v167
    %v350 = vunpack.c.l.b16 %v168
    %v351 = vunpack.c.h.b16 %v168
    %v352 = vunpack.c.l.b16 %v169
    %v353 = vunpack.c.h.b16 %v169
    %v354 = vunpack.c.l.b16 %v170
    %v355 = vunpack.c.h.b16 %v170
    %v356 = vunpack.c.l.b16 %v171
    %v357 = vunpack.c.h.b16 %v171
    %v358 = vunpack.c.l.b16 %v172
    %v359 = vunpack.c.h.b16 %v172
    %v360 = vunpack.c.l.b16 %v173
    %v361 = vunpack.c.h.b16 %v173
    %v362 = vunpack.c.l.b16 %v174
    %v363 = vunpack.c.h.b16 %v174
    %v364 = vunpack.c.l.b16 %v175
    %v365 = vunpack.c.h.b16 %v175
    %v366 = vunpack.c.l.b16 %v176
    %v367 = vunpack.c.h.b16 %v176
    %v368 = vunpack.c.l.b16 %v177
    %v369 = vunpack.c.h.b16 %v177
    %v370 = vunpack.c.l.b16 %v178
    %v371 = vunpack.c.h.b16 %v178
    %v372 = vunpack.c.l.b16 %v179
    %v373 = vunpack.c.h.b16 %v179
    %v374 = vunpack.c.l.b16 %v180
    %v375 = vunpack.c.h.b16 %v180
    %v376 = vunpack.c.l.b16 %v181
    %v377 = vunpack.c.h.b16 %v181
    %v378 = vunpack.c.l.b16 %v182
    %v379 = vunpack.c.h.b16 %v182
    %v380 = vunpack.c.l.b16 %v183
    %v381 = vunpack.c.h.b16 %v183
    %v382 = vunpack.c.l.b16 %v184
    %v383 = vunpack.c.h.b16 %v184
    %v384 = vunpack.c.l.b16 %v185
    %v385 = vunpack.c.h.b16 %v185
    %v386 = vunpack.c.l.b16 %v186
    %v387 = vunpack.c.h.b16 %v186
    %v388 = vunpack.c.l.b16 %v187
    %v389 = vunpack.c.h.b16 %v187
    %v390 = vunpack.c.l.b16 %v188
    %v391 = vunpack.c.h.b16 %v188
    %v392 = vunpack.c.l.b16 %v189
    %v393 = vunpack.c.h.b16 %v189
    %v394 = vunpack.c.l.b16 %v190
    %v395 = vunpack.c.h.b16 %v190
    %v396 = vunpack.c.l.b16 %v191
    %v397 = vunpack.c.h.b16 %v191
    %v398 = vunpack.c.l.b16 %v192
    %v399 = vunpack.c.h.b16 %v192
    %v400 = vunpack.c.l.b16 %v193
    %v401 = vunpack.c.h.b16 %v193
    %v402 = vunpack.c.l.b16 %v194
    %v403 = vunpack.c.h.b16 %v194
    %v404 = vpack.c.b16 %v284, %v276
    %v405 = vpack.c.b16 %v285, %v277
    %v406 = vpack.c.b16 %v286, %v278
    %v407 = vpack.c.b16 %v287, %v279
    %v408 = vpack.c.b16 %v288, %v280
    %v409 = vpack.c.b16 %v289, %v281
    %v410 = vpack.c.b16 %v290, %v282
    %v411 = vpack.c.b16 %v291, %v283
    %v412 = vpack.c.b16 %v300, %v292
    %v413 = vpack.c.b16 %v301, %v293
    %v414 = vpack.c.b16 %v302, %v294
    %v415 = vpack.c.b16 %v303, %v295
    %v416 = vpack.c.b16 %v304, %v296
    %v417 = vpack.c.b16 %v305, %v297
    %v418 = vpack.c.b16 %v306, %v298
    %v419 = vpack.c.b16 %v307, %v299
    %v420 = vpack.c.b16 %v316, %v308
    %v421 = vpack.c.b16 %v317, %v309
    %v422 = vpack.c.b16 %v318, %v310
    %v423 = vpack.c.b16 %v319, %v311
    %v424 = vpack.c.b16 %v320, %v312
    %v425 = vpack.c.b16 %v321, %v313
    %v426 = vpack.c.b16 %v322, %v314
    %v427 = vpack.c.b16 %v323, %v315
    %v428 = vpack.c.b16 %v332, %v324
    %v429 = vpack.c.b16 %v333, %v325
    %v430 = vpack.c.b16 %v334, %v326
    %v431 = vpack.c.b16 %v335, %v327
    %v432 = vpack.c.b16 %v336, %v328
    %v433 = vpack.c.b16 %v337, %v329
    %v434 = vpack.c.b16 %v338, %v330
    %v435 = vpack.c.b16 %v339, %v331
    %v436 = vpack.c.b16 %v348, %v340
    %v437 = vpack.c.b16 %v349, %v341
    %v438 = vpack.c.b16 %v350, %v342
    %v439 = vpack.c.b16 %v351, %v343
    %v440 = vpack.c.b16 %v352, %v344
    %v441 = vpack.c.b16 %v353, %v345
    %v442 = vpack.c.b16 %v354, %v346
    %v443 = vpack.c.b16 %v355, %v347
    %v444 = vpack.c.b16 %v364, %v356
    %v445 = vpack.c.b16 %v365, %v357
    %v446 = vpack.c.b16 %v366, %v358
    %v447 = vpack.c.b16 %v367, %v359
    %v448 = vpack.c.b16 %v368, %v360
    %v449 = vpack.c.b16 %v369, %v361
    %v450 = vpack.c.b16 %v370, %v362
    %v451 = vpack.c.b16 %v371, %v363
    %v452 = vpack.c.b16 %v380, %v372
    %v453 = vpack.c.b16 %v381, %v373
    %v454 = vpack.c.b16 %v382, %v374
    %v455 = vpack.c.b16 %v383, %v375
    %v456 = vpack.c.b16 %v384, %v376
    %v457 = vpack.c.b16 %v385, %v377
    %v458 = vpack.c.b16 %v386, %v378
    %v459 = vpack.c.b16 %v387, %v379
    %v460 = vpack.c.b16 %v396, %v388
    %v461 = vpack.c.b16 %v397, %v389
    %v462 = vpack.c.b16 %v398, %v390
    %v463 = vpack.c.b16 %v399, %v391
    %v464 = vpack.c.b16 %v400, %v392
    %v465 = vpack.c.b16 %v401, %v393
    %v466 = vpack.c.b16 %v402, %v394
    %v467 = vpack.c.b16 %v403, %v395
    %532 = vmatpush.bf16.msra.mxu0 %v460
    %533 = vmatpush.bf16.msra.mxu0 %v452
    %534 = vmatpush.bf16.msra.mxu0 %v444
    %535 = vmatpush.bf16.msra.mxu0 %v436
    %536 = vmatpush.bf16.msra.mxu0 %v428
    %537 = vmatpush.bf16.msra.mxu0 %v420
    %538 = vmatpush.bf16.msra.mxu0 %v412
    %539 = vmatpush.bf16.msra.mxu0 %v404
    %540 = vmatmul.bf16.gmra.mxu0 %v130
    %v541 = vpop.f32.mrf.mxu0
    %v542 = vadd.f32 %v196, %v541
    %v543 = vpop.f32.mrf.mxu0
    %544 = vdwg.mxu0
    %545 = vmatpush.bf16.msra.mxu0 %v461
    %546 = vmatpush.bf16.msra.mxu0 %v453
    %547 = vmatpush.bf16.msra.mxu0 %v445
    %548 = vmatpush.bf16.msra.mxu0 %v437
    %549 = vmatpush.bf16.msra.mxu0 %v429
    %550 = vmatpush.bf16.msra.mxu0 %v421
    %551 = vmatpush.bf16.msra.mxu0 %v413
    %552 = vmatpush.bf16.msra.mxu0 %v405
    %553 = vmatmul.bf16.gmra.mxu0 %v130
    %v554 = vpop.f32.mrf.mxu0
    %v555 = vadd.f32 %v197, %v554
    %v556 = vpop.f32.mrf.mxu0
    %557 = vdwg.mxu0
    %558 = vmatpush.bf16.msra.mxu0 %v462
    %559 = vmatpush.bf16.msra.mxu0 %v454
    %560 = vmatpush.bf16.msra.mxu0 %v446
    %561 = vmatpush.bf16.msra.mxu0 %v438
    %562 = vmatpush.bf16.msra.mxu0 %v430
    %563 = vmatpush.bf16.msra.mxu0 %v422
    %564 = vmatpush.bf16.msra.mxu0 %v414
    %565 = vmatpush.bf16.msra.mxu0 %v406
    %566 = vmatmul.bf16.gmra.mxu0 %v130
    %v567 = vpop.f32.mrf.mxu0
    %v568 = vadd.f32 %v198, %v567
    %v569 = vpop.f32.mrf.mxu0
    %570 = vdwg.mxu0
    %571 = vmatpush.bf16.msra.mxu0 %v463
    %572 = vmatpush.bf16.msra.mxu0 %v455
    %573 = vmatpush.bf16.msra.mxu0 %v447
    %574 = vmatpush.bf16.msra.mxu0 %v439
    %575 = vmatpush.bf16.msra.mxu0 %v431
    %576 = vmatpush.bf16.msra.mxu0 %v423
    %577 = vmatpush.bf16.msra.mxu0 %v415
    %578 = vmatpush.bf16.msra.mxu0 %v407
    %579 = vmatmul.bf16.gmra.mxu0 %v130
    %v580 = vpop.f32.mrf.mxu0
    %v581 = vadd.f32 %v199, %v580
    %v582 = vpop.f32.mrf.mxu0
    %583 = vdwg.mxu0
    %584 = vmatpush.bf16.msra.mxu0 %v464
    %585 = vmatpush.bf16.msra.mxu0 %v456
    %586 = vmatpush.bf16.msra.mxu0 %v448
    %587 = vmatpush.bf16.msra.mxu0 %v440
    %588 = vmatpush.bf16.msra.mxu0 %v432
    %589 = vmatpush.bf16.msra.mxu0 %v424
    %590 = vmatpush.bf16.msra.mxu0 %v416
    %591 = vmatpush.bf16.msra.mxu0 %v408
    %592 = vmatmul.bf16.gmra.mxu0 %v130
    %v593 = vpop.f32.mrf.mxu0
    %v594 = vadd.f32 %v200, %v593
    %v595 = vpop.f32.mrf.mxu0
    %596 = vdwg.mxu0
    %597 = vmatpush.bf16.msra.mxu0 %v465
    %598 = vmatpush.bf16.msra.mxu0 %v457
    %599 = vmatpush.bf16.msra.mxu0 %v449
    %600 = vmatpush.bf16.msra.mxu0 %v441
    %601 = vmatpush.bf16.msra.mxu0 %v433
    %602 = vmatpush.bf16.msra.mxu0 %v425
    %603 = vmatpush.bf16.msra.mxu0 %v417
    %604 = vmatpush.bf16.msra.mxu0 %v409
    %605 = vmatmul.bf16.gmra.mxu0 %v130
    %v606 = vpop.f32.mrf.mxu0
    %v607 = vadd.f32 %v201, %v606
    %v608 = vpop.f32.mrf.mxu0
    %609 = vdwg.mxu0
    %610 = vmatpush.bf16.msra.mxu0 %v466
    %611 = vmatpush.bf16.msra.mxu0 %v458
    %612 = vmatpush.bf16.msra.mxu0 %v450
    %613 = vmatpush.bf16.msra.mxu0 %v442
    %614 = vmatpush.bf16.msra.mxu0 %v434
    %615 = vmatpush.bf16.msra.mxu0 %v426
    %616 = vmatpush.bf16.msra.mxu0 %v418
    %617 = vmatpush.bf16.msra.mxu0 %v410
    %618 = vmatmul.bf16.gmra.mxu0 %v130
    %v619 = vpop.f32.mrf.mxu0
    %v620 = vadd.f32 %v202, %v619
    %v621 = vpop.f32.mrf.mxu0
    %622 = vdwg.mxu0
    %623 = vmatpush.bf16.msra.mxu0 %v467
    %624 = vmatpush.bf16.msra.mxu0 %v459
    %625 = vmatpush.bf16.msra.mxu0 %v451
    %626 = vmatpush.bf16.msra.mxu0 %v443
    %627 = vmatpush.bf16.msra.mxu0 %v435
    %628 = vmatpush.bf16.msra.mxu0 %v427
    %629 = vmatpush.bf16.msra.mxu0 %v419
    %630 = vmatpush.bf16.msra.mxu0 %v411
    %631 = vmatmul.bf16.gmra.mxu0 %v130
    %v632 = vpop.f32.mrf.mxu0
    %v633 = vadd.f32 %v203, %v632
    %v634 = vpop.f32.mrf.mxu0
    %635 = vdwg.mxu0
    %v636 = vmax.f32 %v542, 0.0
    %v637 = vmax.f32 %v555, 0.0
    %v638 = vmax.f32 %v568, 0.0
    %v639 = vmax.f32 %v581, 0.0
    %v640 = vmax.f32 %v594, 0.0
    %v641 = vmax.f32 %v607, 0.0
    %v642 = vmax.f32 %v620, 0.0
    %v643 = vmax.f32 %v633, 0.0
    %v644 = vpack.c.bf16 %v636, %v636
    %v645 = vpack.c.bf16 %v637, %v637
    %v646 = vpack.c.bf16 %v638, %v638
    %v647 = vpack.c.bf16 %v639, %v639
    %v648 = vpack.c.bf16 %v640, %v640
    %v649 = vpack.c.bf16 %v641, %v641
    %v650 = vpack.c.bf16 %v642, %v642
    %v651 = vpack.c.bf16 %v643, %v643
    %v652 = vld [vmem:[#allocation8] sm:$0xff]
    %v653 = vld [vmem:[#allocation8 + $0x8] sm:$0xff]
    %v654 = vld [vmem:[#allocation8 + $0x10] sm:$0xf]
    %v655 = vld [vmem:[#allocation8 + $0x14] sm:$0xff]
    %v656 = vld [vmem:[#allocation8 + $0x1c] sm:$0xff]
    %v657 = vld [vmem:[#allocation8 + $0x24] sm:$0xf]
    %v658 = vld [vmem:[#allocation8 + $0x28] sm:$0xff]
    %v659 = vld [vmem:[#allocation8 + $0x30] sm:$0xff]
    %v660 = vld [vmem:[#allocation8 + $0x38] sm:$0xf]
    %v661 = vld [vmem:[#allocation8 + $0x3c] sm:$0xff]
    %v662 = vld [vmem:[#allocation8 + $0x44] sm:$0xff]
    %v663 = vld [vmem:[#allocation8 + $0x4c] sm:$0xf]
    %v664 = vld [vmem:[#allocation8 + $0x50] sm:$0xff]
    %v665 = vld [vmem:[#allocation8 + $0x58] sm:$0xff]
    %v666 = vld [vmem:[#allocation8 + $0x60] sm:$0xf]
    %v667 = vld [vmem:[#allocation8 + $0x64] sm:$0xff]
    %v668 = vld [vmem:[#allocation8 + $0x6c] sm:$0xff]
    %v669 = vld [vmem:[#allocation8 + $0x74] sm:$0xf]
    %v670 = vld [vmem:[#allocation8 + $0x78] sm:$0xff]
    %v671 = vld [vmem:[#allocation8 + $0x80] sm:$0xff]
    %v672 = vld [vmem:[#allocation8 + $0x88] sm:$0xf]
    %v673 = vld [vmem:[#allocation8 + $0x8c] sm:$0xff]
    %v674 = vld [vmem:[#allocation8 + $0x94] sm:$0xff]
    %v675 = vld [vmem:[#allocation8 + $0x9c] sm:$0xf]
    %v676 = vld [vmem:[#allocation8 + $0xa0] sm:$0xff]
    %v677 = vld [vmem:[#allocation8 + $0xa8] sm:$0xff]
    %v678 = vld [vmem:[#allocation8 + $0xb0] sm:$0xf]
    %v679 = vld [vmem:[#allocation8 + $0xb4] sm:$0xff]
    %v680 = vld [vmem:[#allocation8 + $0xbc] sm:$0xff]
    %v681 = vld [vmem:[#allocation8 + $0xc4] sm:$0xf]
    %v682 = vld [vmem:[#allocation8 + $0xc8] sm:$0xff]
    %v683 = vld [vmem:[#allocation8 + $0xd0] sm:$0xff]
    %v684 = vld [vmem:[#allocation8 + $0xd8] sm:$0xf]
    %v685 = vld [vmem:[#allocation8 + $0xdc] sm:$0xff]
    %v686 = vld [vmem:[#allocation8 + $0xe4] sm:$0xff]
    %v687 = vld [vmem:[#allocation8 + $0xec] sm:$0xf]
    %v688 = vld [vmem:[#allocation8 + $0xf0] sm:$0xff]
    %v689 = vld [vmem:[#allocation8 + $0xf8] sm:$0xff]
    %v690 = vld [vmem:[#allocation8 + $0x100] sm:$0xf]
    %v691 = vld [vmem:[#allocation8 + $0x104] sm:$0xff]
    %v692 = vld [vmem:[#allocation8 + $0x10c] sm:$0xff]
    %v693 = vld [vmem:[#allocation8 + $0x114] sm:$0xf]
    %v694 = vld [vmem:[#allocation8 + $0x118] sm:$0xff]
    %v695 = vld [vmem:[#allocation8 + $0x120] sm:$0xff]
    %v696 = vld [vmem:[#allocation8 + $0x128] sm:$0xf]
    %v697 = vld [vmem:[#allocation8 + $0x12c] sm:$0xff]
    %v698 = vld [vmem:[#allocation8 + $0x134] sm:$0xff]
    %v699 = vld [vmem:[#allocation8 + $0x13c] sm:$0xf]
    %v700 = vld [vmem:[#allocation8 + $0x140] sm:$0xff]
    %v701 = vld [vmem:[#allocation8 + $0x148] sm:$0xff]
    %v702 = vld [vmem:[#allocation8 + $0x150] sm:$0xf]
    %v703 = vld [vmem:[#allocation8 + $0x154] sm:$0xff]
    %v704 = vld [vmem:[#allocation8 + $0x15c] sm:$0xff]
    %v705 = vld [vmem:[#allocation8 + $0x164] sm:$0xf]
    %v706 = vld [vmem:[#allocation8 + $0x168] sm:$0xff]
    %v707 = vld [vmem:[#allocation8 + $0x170] sm:$0xff]
    %v708 = vld [vmem:[#allocation8 + $0x178] sm:$0xf]
    %v709 = vld [vmem:[#allocation8 + $0x17c] sm:$0xff]
    %v710 = vld [vmem:[#allocation8 + $0x184] sm:$0xff]
    %v711 = vld [vmem:[#allocation8 + $0x18c] sm:$0xf]
    %v712 = vld [vmem:[#allocation8 + $0x190] sm:$0xff]
    %v713 = vld [vmem:[#allocation8 + $0x198] sm:$0xff]
    %v714 = vld [vmem:[#allocation8 + $0x1a0] sm:$0xf]
    %v715 = vld [vmem:[#allocation8 + $0x1a4] sm:$0xff]
    %v716 = vld [vmem:[#allocation8 + $0x1ac] sm:$0xff]
    %v717 = vld [vmem:[#allocation8 + $0x1b4] sm:$0xf]
    %v718 = vld [vmem:[#allocation8 + $0x1b8] sm:$0xff]
    %v719 = vld [vmem:[#allocation8 + $0x1c0] sm:$0xff]
    %v720 = vld [vmem:[#allocation8 + $0x1c8] sm:$0xf]
    %v721 = vld [vmem:[#allocation8 + $0x1cc] sm:$0xff]
    %v722 = vld [vmem:[#allocation8 + $0x1d4] sm:$0xff]
    %v723 = vld [vmem:[#allocation8 + $0x1dc] sm:$0xf]
    %v724 = vld [vmem:[#allocation8 + $0x1e0] sm:$0xff]
    %v725 = vld [vmem:[#allocation8 + $0x1e8] sm:$0xff]
    %v726 = vld [vmem:[#allocation8 + $0x1f0] sm:$0xf]
    %v727 = vld [vmem:[#allocation8 + $0x1f4] sm:$0xff]
    %v728 = vld [vmem:[#allocation8 + $0x1fc] sm:$0xff]
    %v729 = vld [vmem:[#allocation8 + $0x204] sm:$0xf]
    %v730 = vld [vmem:[#allocation8 + $0x208] sm:$0xff]
    %v731 = vld [vmem:[#allocation8 + $0x210] sm:$0xff]
    %v732 = vld [vmem:[#allocation8 + $0x218] sm:$0xf]
    %v733 = vld [vmem:[#allocation8 + $0x21c] sm:$0xff]
    %v734 = vld [vmem:[#allocation8 + $0x224] sm:$0xff]
    %v735 = vld [vmem:[#allocation8 + $0x22c] sm:$0xf]
    %v736 = vld [vmem:[#allocation8 + $0x230] sm:$0xff]
    %v737 = vld [vmem:[#allocation8 + $0x238] sm:$0xff]
    %v738 = vld [vmem:[#allocation8 + $0x240] sm:$0xf]
    %v739 = vld [vmem:[#allocation8 + $0x244] sm:$0xff]
    %v740 = vld [vmem:[#allocation8 + $0x24c] sm:$0xff]
    %v741 = vld [vmem:[#allocation8 + $0x254] sm:$0xf]
    %v742 = vld [vmem:[#allocation8 + $0x258] sm:$0xff]
    %v743 = vld [vmem:[#allocation8 + $0x260] sm:$0xff]
    %v744 = vld [vmem:[#allocation8 + $0x268] sm:$0xf]
    %v745 = vld [vmem:[#allocation8 + $0x26c] sm:$0xff]
    %v746 = vld [vmem:[#allocation8 + $0x274] sm:$0xff]
    %v747 = vld [vmem:[#allocation8 + $0x27c] sm:$0xf]
    %v748 = vld [vmem:[#allocation8 + $0x280] sm:$0xff]
    %v749 = vld [vmem:[#allocation8 + $0x288] sm:$0xff]
    %v750 = vld [vmem:[#allocation8 + $0x290] sm:$0xf]
    %v751 = vld [vmem:[#allocation8 + $0x294] sm:$0xff]
    %v752 = vld [vmem:[#allocation8 + $0x29c] sm:$0xff]
    %v753 = vld [vmem:[#allocation8 + $0x2a4] sm:$0xf]
    %v754 = vld [vmem:[#allocation8 + $0x2a8] sm:$0xff]
    %v755 = vld [vmem:[#allocation8 + $0x2b0] sm:$0xff]
    %v756 = vld [vmem:[#allocation8 + $0x2b8] sm:$0xf]
    %v757 = vld [vmem:[#allocation8 + $0x2bc] sm:$0xff]
    %v758 = vld [vmem:[#allocation8 + $0x2c4] sm:$0xff]
    %v759 = vld [vmem:[#allocation8 + $0x2cc] sm:$0xf]
    %v760 = vld [vmem:[#allocation8 + $0x2d0] sm:$0xff]
    %v761 = vld [vmem:[#allocation8 + $0x2d8] sm:$0xff]
    %v762 = vld [vmem:[#allocation8 + $0x2e0] sm:$0xf]
    %v763 = vld [vmem:[#allocation8 + $0x2e4] sm:$0xff]
    %v764 = vld [vmem:[#allocation8 + $0x2ec] sm:$0xff]
    %v765 = vld [vmem:[#allocation8 + $0x2f4] sm:$0xf]
    %v766 = vld [vmem:[#allocation8 + $0x2f8] sm:$0xff]
    %v767 = vld [vmem:[#allocation8 + $0x300] sm:$0xff]
    %v768 = vld [vmem:[#allocation8 + $0x308] sm:$0xf]
    %v769 = vld [vmem:[#allocation8 + $0x30c] sm:$0xff]
    %v770 = vld [vmem:[#allocation8 + $0x314] sm:$0xff]
    %v771 = vld [vmem:[#allocation8 + $0x31c] sm:$0xf]
    %v772 = vld [vmem:[#allocation8 + $0x320] sm:$0xff]
    %v773 = vld [vmem:[#allocation8 + $0x328] sm:$0xff]
    %v774 = vld [vmem:[#allocation8 + $0x330] sm:$0xf]
    %v775 = vld [vmem:[#allocation8 + $0x334] sm:$0xff]
    %v776 = vld [vmem:[#allocation8 + $0x33c] sm:$0xff]
    %v777 = vld [vmem:[#allocation8 + $0x344] sm:$0xf]
    %v778 = vld [vmem:[#allocation8 + $0x348] sm:$0xff]
    %v779 = vld [vmem:[#allocation8 + $0x350] sm:$0xff]
    %v780 = vld [vmem:[#allocation8 + $0x358] sm:$0xf]
    %v781 = vld [vmem:[#allocation8 + $0x35c] sm:$0xff]
    %v782 = vld [vmem:[#allocation8 + $0x364] sm:$0xff]
    %v783 = vld [vmem:[#allocation8 + $0x36c] sm:$0xf]
    %v784 = vld [vmem:[#allocation8 + $0x370] sm:$0xff]
    %v785 = vld [vmem:[#allocation8 + $0x378] sm:$0xff]
    %v786 = vld [vmem:[#allocation8 + $0x380] sm:$0xf]
    %v787 = vld [vmem:[#allocation8 + $0x384] sm:$0xff]
    %v788 = vld [vmem:[#allocation8 + $0x38c] sm:$0xff]
    %v789 = vld [vmem:[#allocation8 + $0x394] sm:$0xf]
    %v790 = vld [vmem:[#allocation8 + $0x398] sm:$0xff]
    %v791 = vld [vmem:[#allocation8 + $0x3a0] sm:$0xff]
    %v792 = vld [vmem:[#allocation8 + $0x3a8] sm:$0xf]
    %v793 = vld [vmem:[#allocation8 + $0x3ac] sm:$0xff]
    %v794 = vld [vmem:[#allocation8 + $0x3b4] sm:$0xff]
    %v795 = vld [vmem:[#allocation8 + $0x3bc] sm:$0xf]
    %v796 = vld [vmem:[#allocation8 + $0x3c0] sm:$0xff]
    %v797 = vld [vmem:[#allocation8 + $0x3c8] sm:$0xff]
    %v798 = vld [vmem:[#allocation8 + $0x3d0] sm:$0xf]
    %v799 = vld [vmem:[#allocation8 + $0x3d4] sm:$0xff]
    %v800 = vld [vmem:[#allocation8 + $0x3dc] sm:$0xff]
    %v801 = vld [vmem:[#allocation8 + $0x3e4] sm:$0xf]
    %v802 = vld [vmem:[#allocation8 + $0x3e8] sm:$0xff]
    %v803 = vld [vmem:[#allocation8 + $0x3f0] sm:$0xff]
    %v804 = vld [vmem:[#allocation8 + $0x3f8] sm:$0xf]
    %v805 = vld [vmem:[#allocation8 + $0x3fc] sm:$0xff]
    %v806 = vld [vmem:[#allocation8 + $0x404] sm:$0xff]
    %v807 = vld [vmem:[#allocation8 + $0x40c] sm:$0xf]
    %v808 = vld [vmem:[#allocation8 + $0x410] sm:$0xff]
    %v809 = vld [vmem:[#allocation8 + $0x418] sm:$0xff]
    %v810 = vld [vmem:[#allocation8 + $0x420] sm:$0xf]
    %v811 = vld [vmem:[#allocation8 + $0x424] sm:$0xff]
    %v812 = vld [vmem:[#allocation8 + $0x42c] sm:$0xff]
    %v813 = vld [vmem:[#allocation8 + $0x434] sm:$0xf]
    %v814 = vld [vmem:[#allocation8 + $0x438] sm:$0xff]
    %v815 = vld [vmem:[#allocation8 + $0x440] sm:$0xff]
    %v816 = vld [vmem:[#allocation8 + $0x448] sm:$0xf]
    %v817 = vld [vmem:[#allocation8 + $0x44c] sm:$0xff]
    %v818 = vld [vmem:[#allocation8 + $0x454] sm:$0xff]
    %v819 = vld [vmem:[#allocation8 + $0x45c] sm:$0xf]
    %v820 = vld [vmem:[#allocation8 + $0x460] sm:$0xff]
    %v821 = vld [vmem:[#allocation8 + $0x468] sm:$0xff]
    %v822 = vld [vmem:[#allocation8 + $0x470] sm:$0xf]
    %v823 = vld [vmem:[#allocation8 + $0x474] sm:$0xff]
    %v824 = vld [vmem:[#allocation8 + $0x47c] sm:$0xff]
    %v825 = vld [vmem:[#allocation8 + $0x484] sm:$0xf]
    %v826 = vld [vmem:[#allocation8 + $0x488] sm:$0xff]
    %v827 = vld [vmem:[#allocation8 + $0x490] sm:$0xff]
    %v828 = vld [vmem:[#allocation8 + $0x498] sm:$0xf]
    %v829 = vld [vmem:[#allocation8 + $0x49c] sm:$0xff]
    %v830 = vld [vmem:[#allocation8 + $0x4a4] sm:$0xff]
    %v831 = vld [vmem:[#allocation8 + $0x4ac] sm:$0xf]
    %v832 = vld [vmem:[#allocation8 + $0x4b0] sm:$0xff]
    %v833 = vld [vmem:[#allocation8 + $0x4b8] sm:$0xff]
    %v834 = vld [vmem:[#allocation8 + $0x4c0] sm:$0xf]
    %v835 = vld [vmem:[#allocation8 + $0x4c4] sm:$0xff]
    %v836 = vld [vmem:[#allocation8 + $0x4cc] sm:$0xff]
    %v837 = vld [vmem:[#allocation8 + $0x4d4] sm:$0xf]
    %v838 = vld [vmem:[#allocation8 + $0x4d8] sm:$0xff]
    %v839 = vld [vmem:[#allocation8 + $0x4e0] sm:$0xff]
    %v840 = vld [vmem:[#allocation8 + $0x4e8] sm:$0xf]
    %v841 = vld [vmem:[#allocation8 + $0x4ec] sm:$0xff]
    %v842 = vld [vmem:[#allocation8 + $0x4f4] sm:$0xff]
    %v843 = vld [vmem:[#allocation8 + $0x4fc] sm:$0xf]
    %v844 = vld [vmem:[#allocation8 + $0x500] sm:$0xff]
    %v845 = vld [vmem:[#allocation8 + $0x508] sm:$0xff]
    %v846 = vld [vmem:[#allocation8 + $0x510] sm:$0xf]
    %v847 = vld [vmem:[#allocation8 + $0x514] sm:$0xff]
    %v848 = vld [vmem:[#allocation8 + $0x51c] sm:$0xff]
    %v849 = vld [vmem:[#allocation8 + $0x524] sm:$0xf]
    %v850 = vld [vmem:[#allocation8 + $0x528] sm:$0xff]
    %v851 = vld [vmem:[#allocation8 + $0x530] sm:$0xff]
    %v852 = vld [vmem:[#allocation8 + $0x538] sm:$0xf]
    %v853 = vld [vmem:[#allocation8 + $0x53c] sm:$0xff]
    %v854 = vld [vmem:[#allocation8 + $0x544] sm:$0xff]
    %v855 = vld [vmem:[#allocation8 + $0x54c] sm:$0xf]
    %v856 = vld [vmem:[#allocation8 + $0x550] sm:$0xff]
    %v857 = vld [vmem:[#allocation8 + $0x558] sm:$0xff]
    %v858 = vld [vmem:[#allocation8 + $0x560] sm:$0xf]
    %v859 = vld [vmem:[#allocation8 + $0x564] sm:$0xff]
    %v860 = vld [vmem:[#allocation8 + $0x56c] sm:$0xff]
    %v861 = vld [vmem:[#allocation8 + $0x574] sm:$0xf]
    %v862 = vld [vmem:[#allocation8 + $0x578] sm:$0xff]
    %v863 = vld [vmem:[#allocation8 + $0x580] sm:$0xff]
    %v864 = vld [vmem:[#allocation8 + $0x588] sm:$0xf]
    %v865 = vld [vmem:[#allocation8 + $0x58c] sm:$0xff]
    %v866 = vld [vmem:[#allocation8 + $0x594] sm:$0xff]
    %v867 = vld [vmem:[#allocation8 + $0x59c] sm:$0xf]
    %v868 = vld [vmem:[#allocation8 + $0x5a0] sm:$0xff]
    %v869 = vld [vmem:[#allocation8 + $0x5a8] sm:$0xff]
    %v870 = vld [vmem:[#allocation8 + $0x5b0] sm:$0xf]
    %v871 = vld [vmem:[#allocation8 + $0x5b4] sm:$0xff]
    %v872 = vld [vmem:[#allocation8 + $0x5bc] sm:$0xff]
    %v873 = vld [vmem:[#allocation8 + $0x5c4] sm:$0xf]
    %v874 = vld [vmem:[#allocation8 + $0x5c8] sm:$0xff]
    %v875 = vld [vmem:[#allocation8 + $0x5d0] sm:$0xff]
    %v876 = vld [vmem:[#allocation8 + $0x5d8] sm:$0xf]
    %v877 = vld [vmem:[#allocation8 + $0x5dc] sm:$0xff]
    %v878 = vld [vmem:[#allocation8 + $0x5e4] sm:$0xff]
    %v879 = vld [vmem:[#allocation8 + $0x5ec] sm:$0xf]
    %v880 = vld [vmem:[#allocation8 + $0x5f0] sm:$0xff]
    %v881 = vld [vmem:[#allocation8 + $0x5f8] sm:$0xff]
    %v882 = vld [vmem:[#allocation8 + $0x600] sm:$0xf]
    %v883 = vld [vmem:[#allocation8 + $0x604] sm:$0xff]
    %v884 = vld [vmem:[#allocation8 + $0x60c] sm:$0xff]
    %v885 = vld [vmem:[#allocation8 + $0x614] sm:$0xf]
    %v886 = vld [vmem:[#allocation8 + $0x618] sm:$0xff]
    %v887 = vld [vmem:[#allocation8 + $0x620] sm:$0xff]
    %v888 = vld [vmem:[#allocation8 + $0x628] sm:$0xf]
    %v889 = vld [vmem:[#allocation8 + $0x62c] sm:$0xff]
    %v890 = vld [vmem:[#allocation8 + $0x634] sm:$0xff]
    %v891 = vld [vmem:[#allocation8 + $0x63c] sm:$0xf]
    %v892 = vld [vmem:[#allocation8 + $0x640] sm:$0xff]
    %v893 = vld [vmem:[#allocation8 + $0x648] sm:$0xff]
    %v894 = vld [vmem:[#allocation8 + $0x650] sm:$0xf]
    %v895 = vld [vmem:[#allocation8 + $0x654] sm:$0xff]
    %v896 = vld [vmem:[#allocation8 + $0x65c] sm:$0xff]
    %v897 = vld [vmem:[#allocation8 + $0x664] sm:$0xf]
    %v898 = vld [vmem:[#allocation8 + $0x668] sm:$0xff]
    %v899 = vld [vmem:[#allocation8 + $0x670] sm:$0xff]
    %v900 = vld [vmem:[#allocation8 + $0x678] sm:$0xf]
    %v901 = vld [vmem:[#allocation8 + $0x67c] sm:$0xff]
    %v902 = vld [vmem:[#allocation8 + $0x684] sm:$0xff]
    %v903 = vld [vmem:[#allocation8 + $0x68c] sm:$0xf]
    %v904 = vld [vmem:[#allocation8 + $0x690] sm:$0xff]
    %v905 = vld [vmem:[#allocation8 + $0x698] sm:$0xff]
    %v906 = vld [vmem:[#allocation8 + $0x6a0] sm:$0xf]
    %v907 = vld [vmem:[#allocation8 + $0x6a4] sm:$0xff]
    %v908 = vld [vmem:[#allocation8 + $0x6ac] sm:$0xff]
    %v909 = vld [vmem:[#allocation8 + $0x6b4] sm:$0xf]
    %v910 = vld [vmem:[#allocation8 + $0x6b8] sm:$0xff]
    %v911 = vld [vmem:[#allocation8 + $0x6c0] sm:$0xff]
    %v912 = vld [vmem:[#allocation8 + $0x6c8] sm:$0xf]
    %v913 = vld [vmem:[#allocation8 + $0x6cc] sm:$0xff]
    %v914 = vld [vmem:[#allocation8 + $0x6d4] sm:$0xff]
    %v915 = vld [vmem:[#allocation8 + $0x6dc] sm:$0xf]
    %v916 = vld [vmem:[#allocation8 + $0x6e0] sm:$0xff]
    %v917 = vld [vmem:[#allocation8 + $0x6e8] sm:$0xff]
    %v918 = vld [vmem:[#allocation8 + $0x6f0] sm:$0xf]
    %v919 = vld [vmem:[#allocation8 + $0x6f4] sm:$0xff]
    %v920 = vld [vmem:[#allocation8 + $0x6fc] sm:$0xff]
    %v921 = vld [vmem:[#allocation8 + $0x704] sm:$0xf]
    %v922 = vld [vmem:[#allocation8 + $0x708] sm:$0xff]
    %v923 = vld [vmem:[#allocation8 + $0x710] sm:$0xff]
    %v924 = vld [vmem:[#allocation8 + $0x718] sm:$0xf]
    %v925 = vld [vmem:[#allocation8 + $0x71c] sm:$0xff]
    %v926 = vld [vmem:[#allocation8 + $0x724] sm:$0xff]
    %v927 = vld [vmem:[#allocation8 + $0x72c] sm:$0xf]
    %v928 = vld [vmem:[#allocation8 + $0x730] sm:$0xff]
    %v929 = vld [vmem:[#allocation8 + $0x738] sm:$0xff]
    %v930 = vld [vmem:[#allocation8 + $0x740] sm:$0xf]
    %v931 = vld [vmem:[#allocation8 + $0x744] sm:$0xff]
    %v932 = vld [vmem:[#allocation8 + $0x74c] sm:$0xff]
    %v933 = vld [vmem:[#allocation8 + $0x754] sm:$0xf]
    %v934 = vld [vmem:[#allocation8 + $0x758] sm:$0xff]
    %v935 = vld [vmem:[#allocation8 + $0x760] sm:$0xff]
    %v936 = vld [vmem:[#allocation8 + $0x768] sm:$0xf]
    %v937 = vld [vmem:[#allocation8 + $0x76c] sm:$0xff]
    %v938 = vld [vmem:[#allocation8 + $0x774] sm:$0xff]
    %v939 = vld [vmem:[#allocation8 + $0x77c] sm:$0xf]
    %v940 = vld [vmem:[#allocation8 + $0x780] sm:$0xff]
    %v941 = vld [vmem:[#allocation8 + $0x788] sm:$0xff]
    %v942 = vld [vmem:[#allocation8 + $0x790] sm:$0xf]
    %v943 = vld [vmem:[#allocation8 + $0x794] sm:$0xff]
    %v944 = vld [vmem:[#allocation8 + $0x79c] sm:$0xff]
    %v945 = vld [vmem:[#allocation8 + $0x7a4] sm:$0xf]
    %v946 = vld [vmem:[#allocation8 + $0x7a8] sm:$0xff]
    %v947 = vld [vmem:[#allocation8 + $0x7b0] sm:$0xff]
    %v948 = vld [vmem:[#allocation8 + $0x7b8] sm:$0xf]
    %v949 = vld [vmem:[#allocation8 + $0x7bc] sm:$0xff]
    %v950 = vld [vmem:[#allocation8 + $0x7c4] sm:$0xff]
    %v951 = vld [vmem:[#allocation8 + $0x7cc] sm:$0xf]
    %v952 = vld [vmem:[#allocation8 + $0x7d0] sm:$0xff]
    %v953 = vld [vmem:[#allocation8 + $0x7d8] sm:$0xff]
    %v954 = vld [vmem:[#allocation8 + $0x7e0] sm:$0xf]
    %v955 = vld [vmem:[#allocation8 + $0x7e4] sm:$0xff]
    %v956 = vld [vmem:[#allocation8 + $0x7ec] sm:$0xff]
    %v957 = vld [vmem:[#allocation8 + $0x7f4] sm:$0xf]
    %v958 = vld [vmem:[#allocation8 + $0x7f8] sm:$0xff]
    %v959 = vld [vmem:[#allocation8 + $0x800] sm:$0xff]
    %v960 = vld [vmem:[#allocation8 + $0x808] sm:$0xf]
    %v961 = vld [vmem:[#allocation8 + $0x80c] sm:$0xff]
    %v962 = vld [vmem:[#allocation8 + $0x814] sm:$0xff]
    %v963 = vld [vmem:[#allocation8 + $0x81c] sm:$0xf]
    %v964 = vld [vmem:[#allocation8 + $0x820] sm:$0xff]
    %v965 = vld [vmem:[#allocation8 + $0x828] sm:$0xff]
    %v966 = vld [vmem:[#allocation8 + $0x830] sm:$0xf]
    %v967 = vld [vmem:[#allocation8 + $0x834] sm:$0xff]
    %v968 = vld [vmem:[#allocation8 + $0x83c] sm:$0xff]
    %v969 = vld [vmem:[#allocation8 + $0x844] sm:$0xf]
    %v970 = vld [vmem:[#allocation8 + $0x848] sm:$0xff]
    %v971 = vld [vmem:[#allocation8 + $0x850] sm:$0xff]
    %v972 = vld [vmem:[#allocation8 + $0x858] sm:$0xf]
    %v973 = vld [vmem:[#allocation8 + $0x85c] sm:$0xff]
    %v974 = vld [vmem:[#allocation8 + $0x864] sm:$0xff]
    %v975 = vld [vmem:[#allocation8 + $0x86c] sm:$0xf]
    %v976 = vld [vmem:[#allocation8 + $0x870] sm:$0xff]
    %v977 = vld [vmem:[#allocation8 + $0x878] sm:$0xff]
    %v978 = vld [vmem:[#allocation8 + $0x880] sm:$0xf]
    %v979 = vld [vmem:[#allocation8 + $0x884] sm:$0xff]
    %v980 = vld [vmem:[#allocation8 + $0x88c] sm:$0xff]
    %v981 = vld [vmem:[#allocation8 + $0x894] sm:$0xf]
    %v982 = vld [vmem:[#allocation8 + $0x898] sm:$0xff]
    %v983 = vld [vmem:[#allocation8 + $0x8a0] sm:$0xff]
    %v984 = vld [vmem:[#allocation8 + $0x8a8] sm:$0xf]
    %v985 = vld [vmem:[#allocation8 + $0x8ac] sm:$0xff]
    %v986 = vld [vmem:[#allocation8 + $0x8b4] sm:$0xff]
    %v987 = vld [vmem:[#allocation8 + $0x8bc] sm:$0xf]
    %v988 = vld [vmem:[#allocation8 + $0x8c0] sm:$0xff]
    %v989 = vld [vmem:[#allocation8 + $0x8c8] sm:$0xff]
    %v990 = vld [vmem:[#allocation8 + $0x8d0] sm:$0xf]
    %v991 = vld [vmem:[#allocation8 + $0x8d4] sm:$0xff]
    %v992 = vld [vmem:[#allocation8 + $0x8dc] sm:$0xff]
    %v993 = vld [vmem:[#allocation8 + $0x8e4] sm:$0xf]
    %v994 = vld [vmem:[#allocation8 + $0x8e8] sm:$0xff]
    %v995 = vld [vmem:[#allocation8 + $0x8f0] sm:$0xff]
    %v996 = vld [vmem:[#allocation8 + $0x8f8] sm:$0xf]
    %v997 = vld [vmem:[#allocation8 + $0x8fc] sm:$0xff]
    %v998 = vld [vmem:[#allocation8 + $0x904] sm:$0xff]
    %v999 = vld [vmem:[#allocation8 + $0x90c] sm:$0xf]
    %v1000 = vld [vmem:[#allocation8 + $0x910] sm:$0xff]
    %v1001 = vld [vmem:[#allocation8 + $0x918] sm:$0xff]
    %v1002 = vld [vmem:[#allocation8 + $0x920] sm:$0xf]
    %v1003 = vld [vmem:[#allocation8 + $0x924] sm:$0xff]
    %v1004 = vld [vmem:[#allocation8 + $0x92c] sm:$0xff]
    %v1005 = vld [vmem:[#allocation8 + $0x934] sm:$0xf]
    %v1006 = vld [vmem:[#allocation8 + $0x938] sm:$0xff]
    %v1007 = vld [vmem:[#allocation8 + $0x940] sm:$0xff]
    %v1008 = vld [vmem:[#allocation8 + $0x948] sm:$0xf]
    %v1009 = vld [vmem:[#allocation8 + $0x94c] sm:$0xff]
    %v1010 = vld [vmem:[#allocation8 + $0x954] sm:$0xff]
    %v1011 = vld [vmem:[#allocation8 + $0x95c] sm:$0xf]
    %v1012 = vld [vmem:[#allocation8 + $0x960] sm:$0xff]
    %v1013 = vld [vmem:[#allocation8 + $0x968] sm:$0xff]
    %v1014 = vld [vmem:[#allocation8 + $0x970] sm:$0xf]
    %v1015 = vld [vmem:[#allocation8 + $0x974] sm:$0xff]
    %v1016 = vld [vmem:[#allocation8 + $0x97c] sm:$0xff]
    %v1017 = vld [vmem:[#allocation8 + $0x984] sm:$0xf]
    %v1018 = vld [vmem:[#allocation8 + $0x988] sm:$0xff]
    %v1019 = vld [vmem:[#allocation8 + $0x990] sm:$0xff]
    %v1020 = vld [vmem:[#allocation8 + $0x998] sm:$0xf]
    %v1021 = vld [vmem:[#allocation8 + $0x99c] sm:$0xff]
    %v1022 = vld [vmem:[#allocation8 + $0x9a4] sm:$0xff]
    %v1023 = vld [vmem:[#allocation8 + $0x9ac] sm:$0xf]
    %v1024 = vld [vmem:[#allocation8 + $0x9b0] sm:$0xff]
    %v1025 = vld [vmem:[#allocation8 + $0x9b8] sm:$0xff]
    %v1026 = vld [vmem:[#allocation8 + $0x9c0] sm:$0xf]
    %v1027 = vld [vmem:[#allocation8 + $0x9c4] sm:$0xff]
    %v1028 = vld [vmem:[#allocation8 + $0x9cc] sm:$0xff]
    %v1029 = vld [vmem:[#allocation8 + $0x9d4] sm:$0xf]
    %v1030 = vld [vmem:[#allocation8 + $0x9d8] sm:$0xff]
    %v1031 = vld [vmem:[#allocation8 + $0x9e0] sm:$0xff]
    %v1032 = vld [vmem:[#allocation8 + $0x9e8] sm:$0xf]
    %v1033 = vld [vmem:[#allocation8 + $0x9ec] sm:$0xff]
    %v1034 = vld [vmem:[#allocation8 + $0x9f4] sm:$0xff]
    %v1035 = vld [vmem:[#allocation8 + $0x9fc] sm:$0xf]
    %v1037 = vperm.slane %v98, 0
    %v1038 = vperm.slane %v98, 1
    %v1039 = vperm.slane %v98, 2
    %v1040 = vperm.slane %v98, 3
    %v1041 = vperm.slane %v98, 4
    %v1431 = vunpack.c.l.b16 %v652
    %v1432 = vunpack.c.h.b16 %v652
    %v1433 = vunpack.c.l.b16 %v653
    %v1434 = vunpack.c.h.b16 %v653
    %v1435 = vunpack.c.l.b16 %v654
    %v1436 = vunpack.c.l.b16 %v655
    %v1437 = vunpack.c.h.b16 %v655
    %v1438 = vunpack.c.l.b16 %v656
    %v1439 = vunpack.c.h.b16 %v656
    %v1440 = vunpack.c.l.b16 %v657
    %v1441 = vunpack.c.l.b16 %v658
    %v1442 = vunpack.c.h.b16 %v658
    %v1443 = vunpack.c.l.b16 %v659
    %v1444 = vunpack.c.h.b16 %v659
    %v1445 = vunpack.c.l.b16 %v660
    %v1446 = vunpack.c.l.b16 %v661
    %v1447 = vunpack.c.h.b16 %v661
    %v1448 = vunpack.c.l.b16 %v662
    %v1449 = vunpack.c.h.b16 %v662
    %v1450 = vunpack.c.l.b16 %v663
    %v1451 = vunpack.c.l.b16 %v664
    %v1452 = vunpack.c.h.b16 %v664
    %v1453 = vunpack.c.l.b16 %v665
    %v1454 = vunpack.c.h.b16 %v665
    %v1455 = vunpack.c.l.b16 %v666
    %v1456 = vunpack.c.l.b16 %v667
    %v1457 = vunpack.c.h.b16 %v667
    %v1458 = vunpack.c.l.b16 %v668
    %v1459 = vunpack.c.h.b16 %v668
    %v1460 = vunpack.c.l.b16 %v669
    %v1461 = vunpack.c.l.b16 %v670
    %v1462 = vunpack.c.h.b16 %v670
    %v1463 = vunpack.c.l.b16 %v671
    %v1464 = vunpack.c.h.b16 %v671
    %v1465 = vunpack.c.l.b16 %v672
    %v1466 = vunpack.c.l.b16 %v673
    %v1467 = vunpack.c.h.b16 %v673
    %v1468 = vunpack.c.l.b16 %v674
    %v1469 = vunpack.c.h.b16 %v674
    %v1470 = vunpack.c.l.b16 %v675
    %v1471 = vunpack.c.l.b16 %v676
    %v1472 = vunpack.c.h.b16 %v676
    %v1473 = vunpack.c.l.b16 %v677
    %v1474 = vunpack.c.h.b16 %v677
    %v1475 = vunpack.c.l.b16 %v678
    %v1476 = vunpack.c.l.b16 %v679
    %v1477 = vunpack.c.h.b16 %v679
    %v1478 = vunpack.c.l.b16 %v680
    %v1479 = vunpack.c.h.b16 %v680
    %v1480 = vunpack.c.l.b16 %v681
    %v1481 = vunpack.c.l.b16 %v682
    %v1482 = vunpack.c.h.b16 %v682
    %v1483 = vunpack.c.l.b16 %v683
    %v1484 = vunpack.c.h.b16 %v683
    %v1485 = vunpack.c.l.b16 %v684
    %v1486 = vunpack.c.l.b16 %v685
    %v1487 = vunpack.c.h.b16 %v685
    %v1488 = vunpack.c.l.b16 %v686
    %v1489 = vunpack.c.h.b16 %v686
    %v1490 = vunpack.c.l.b16 %v687
    %v1491 = vunpack.c.l.b16 %v688
    %v1492 = vunpack.c.h.b16 %v688
    %v1493 = vunpack.c.l.b16 %v689
    %v1494 = vunpack.c.h.b16 %v689
    %v1495 = vunpack.c.l.b16 %v690
    %v1496 = vunpack.c.l.b16 %v691
    %v1497 = vunpack.c.h.b16 %v691
    %v1498 = vunpack.c.l.b16 %v692
    %v1499 = vunpack.c.h.b16 %v692
    %v1500 = vunpack.c.l.b16 %v693
    %v1501 = vunpack.c.l.b16 %v694
    %v1502 = vunpack.c.h.b16 %v694
    %v1503 = vunpack.c.l.b16 %v695
    %v1504 = vunpack.c.h.b16 %v695
    %v1505 = vunpack.c.l.b16 %v696
    %v1506 = vunpack.c.l.b16 %v697
    %v1507 = vunpack.c.h.b16 %v697
    %v1508 = vunpack.c.l.b16 %v698
    %v1509 = vunpack.c.h.b16 %v698
    %v1510 = vunpack.c.l.b16 %v699
    %v1511 = vunpack.c.l.b16 %v700
    %v1512 = vunpack.c.h.b16 %v700
    %v1513 = vunpack.c.l.b16 %v701
    %v1514 = vunpack.c.h.b16 %v701
    %v1515 = vunpack.c.l.b16 %v702
    %v1516 = vunpack.c.l.b16 %v703
    %v1517 = vunpack.c.h.b16 %v703
    %v1518 = vunpack.c.l.b16 %v704
    %v1519 = vunpack.c.h.b16 %v704
    %v1520 = vunpack.c.l.b16 %v705
    %v1521 = vunpack.c.l.b16 %v706
    %v1522 = vunpack.c.h.b16 %v706
    %v1523 = vunpack.c.l.b16 %v707
    %v1524 = vunpack.c.h.b16 %v707
    %v1525 = vunpack.c.l.b16 %v708
    %v1526 = vunpack.c.l.b16 %v709
    %v1527 = vunpack.c.h.b16 %v709
    %v1528 = vunpack.c.l.b16 %v710
    %v1529 = vunpack.c.h.b16 %v710
    %v1530 = vunpack.c.l.b16 %v711
    %v1531 = vunpack.c.l.b16 %v712
    %v1532 = vunpack.c.h.b16 %v712
    %v1533 = vunpack.c.l.b16 %v713
    %v1534 = vunpack.c.h.b16 %v713
    %v1535 = vunpack.c.l.b16 %v714
    %v1536 = vunpack.c.l.b16 %v715
    %v1537 = vunpack.c.h.b16 %v715
    %v1538 = vunpack.c.l.b16 %v716
    %v1539 = vunpack.c.h.b16 %v716
    %v1540 = vunpack.c.l.b16 %v717
    %v1541 = vunpack.c.l.b16 %v718
    %v1542 = vunpack.c.h.b16 %v718
    %v1543 = vunpack.c.l.b16 %v719
    %v1544 = vunpack.c.h.b16 %v719
    %v1545 = vunpack.c.l.b16 %v720
    %v1546 = vunpack.c.l.b16 %v721
    %v1547 = vunpack.c.h.b16 %v721
    %v1548 = vunpack.c.l.b16 %v722
    %v1549 = vunpack.c.h.b16 %v722
    %v1550 = vunpack.c.l.b16 %v723
    %v1551 = vunpack.c.l.b16 %v724
    %v1552 = vunpack.c.h.b16 %v724
    %v1553 = vunpack.c.l.b16 %v725
    %v1554 = vunpack.c.h.b16 %v725
    %v1555 = vunpack.c.l.b16 %v726
    %v1556 = vunpack.c.l.b16 %v727
    %v1557 = vunpack.c.h.b16 %v727
    %v1558 = vunpack.c.l.b16 %v728
    %v1559 = vunpack.c.h.b16 %v728
    %v1560 = vunpack.c.l.b16 %v729
    %v1561 = vunpack.c.l.b16 %v730
    %v1562 = vunpack.c.h.b16 %v730
    %v1563 = vunpack.c.l.b16 %v731
    %v1564 = vunpack.c.h.b16 %v731
    %v1565 = vunpack.c.l.b16 %v732
    %v1566 = vunpack.c.l.b16 %v733
    %v1567 = vunpack.c.h.b16 %v733
    %v1568 = vunpack.c.l.b16 %v734
    %v1569 = vunpack.c.h.b16 %v734
    %v1570 = vunpack.c.l.b16 %v735
    %v1571 = vunpack.c.l.b16 %v736
    %v1572 = vunpack.c.h.b16 %v736
    %v1573 = vunpack.c.l.b16 %v737
    %v1574 = vunpack.c.h.b16 %v737
    %v1575 = vunpack.c.l.b16 %v738
    %v1576 = vunpack.c.l.b16 %v739
    %v1577 = vunpack.c.h.b16 %v739
    %v1578 = vunpack.c.l.b16 %v740
    %v1579 = vunpack.c.h.b16 %v740
    %v1580 = vunpack.c.l.b16 %v741
    %v1581 = vunpack.c.l.b16 %v742
    %v1582 = vunpack.c.h.b16 %v742
    %v1583 = vunpack.c.l.b16 %v743
    %v1584 = vunpack.c.h.b16 %v743
    %v1585 = vunpack.c.l.b16 %v744
    %v1586 = vunpack.c.l.b16 %v745
    %v1587 = vunpack.c.h.b16 %v745
    %v1588 = vunpack.c.l.b16 %v746
    %v1589 = vunpack.c.h.b16 %v746
    %v1590 = vunpack.c.l.b16 %v747
    %v1591 = vunpack.c.l.b16 %v748
    %v1592 = vunpack.c.h.b16 %v748
    %v1593 = vunpack.c.l.b16 %v749
    %v1594 = vunpack.c.h.b16 %v749
    %v1595 = vunpack.c.l.b16 %v750
    %v1596 = vunpack.c.l.b16 %v751
    %v1597 = vunpack.c.h.b16 %v751
    %v1598 = vunpack.c.l.b16 %v752
    %v1599 = vunpack.c.h.b16 %v752
    %v1600 = vunpack.c.l.b16 %v753
    %v1601 = vunpack.c.l.b16 %v754
    %v1602 = vunpack.c.h.b16 %v754
    %v1603 = vunpack.c.l.b16 %v755
    %v1604 = vunpack.c.h.b16 %v755
    %v1605 = vunpack.c.l.b16 %v756
    %v1606 = vunpack.c.l.b16 %v757
    %v1607 = vunpack.c.h.b16 %v757
    %v1608 = vunpack.c.l.b16 %v758
    %v1609 = vunpack.c.h.b16 %v758
    %v1610 = vunpack.c.l.b16 %v759
    %v1611 = vunpack.c.l.b16 %v760
    %v1612 = vunpack.c.h.b16 %v760
    %v1613 = vunpack.c.l.b16 %v761
    %v1614 = vunpack.c.h.b16 %v761
    %v1615 = vunpack.c.l.b16 %v762
    %v1616 = vunpack.c.l.b16 %v763
    %v1617 = vunpack.c.h.b16 %v763
    %v1618 = vunpack.c.l.b16 %v764
    %v1619 = vunpack.c.h.b16 %v764
    %v1620 = vunpack.c.l.b16 %v765
    %v1621 = vunpack.c.l.b16 %v766
    %v1622 = vunpack.c.h.b16 %v766
    %v1623 = vunpack.c.l.b16 %v767
    %v1624 = vunpack.c.h.b16 %v767
    %v1625 = vunpack.c.l.b16 %v768
    %v1626 = vunpack.c.l.b16 %v769
    %v1627 = vunpack.c.h.b16 %v769
    %v1628 = vunpack.c.l.b16 %v770
    %v1629 = vunpack.c.h.b16 %v770
    %v1630 = vunpack.c.l.b16 %v771
    %v1631 = vunpack.c.l.b16 %v772
    %v1632 = vunpack.c.h.b16 %v772
    %v1633 = vunpack.c.l.b16 %v773
    %v1634 = vunpack.c.h.b16 %v773
    %v1635 = vunpack.c.l.b16 %v774
    %v1636 = vunpack.c.l.b16 %v775
    %v1637 = vunpack.c.h.b16 %v775
    %v1638 = vunpack.c.l.b16 %v776
    %v1639 = vunpack.c.h.b16 %v776
    %v1640 = vunpack.c.l.b16 %v777
    %v1641 = vunpack.c.l.b16 %v778
    %v1642 = vunpack.c.h.b16 %v778
    %v1643 = vunpack.c.l.b16 %v779
    %v1644 = vunpack.c.h.b16 %v779
    %v1645 = vunpack.c.l.b16 %v780
    %v1646 = vunpack.c.l.b16 %v781
    %v1647 = vunpack.c.h.b16 %v781
    %v1648 = vunpack.c.l.b16 %v782
    %v1649 = vunpack.c.h.b16 %v782
    %v1650 = vunpack.c.l.b16 %v783
    %v1651 = vunpack.c.l.b16 %v784
    %v1652 = vunpack.c.h.b16 %v784
    %v1653 = vunpack.c.l.b16 %v785
    %v1654 = vunpack.c.h.b16 %v785
    %v1655 = vunpack.c.l.b16 %v786
    %v1656 = vunpack.c.l.b16 %v787
    %v1657 = vunpack.c.h.b16 %v787
    %v1658 = vunpack.c.l.b16 %v788
    %v1659 = vunpack.c.h.b16 %v788
    %v1660 = vunpack.c.l.b16 %v789
    %v1661 = vunpack.c.l.b16 %v790
    %v1662 = vunpack.c.h.b16 %v790
    %v1663 = vunpack.c.l.b16 %v791
    %v1664 = vunpack.c.h.b16 %v791
    %v1665 = vunpack.c.l.b16 %v792
    %v1666 = vunpack.c.l.b16 %v793
    %v1667 = vunpack.c.h.b16 %v793
    %v1668 = vunpack.c.l.b16 %v794
    %v1669 = vunpack.c.h.b16 %v794
    %v1670 = vunpack.c.l.b16 %v795
    %v1671 = vunpack.c.l.b16 %v796
    %v1672 = vunpack.c.h.b16 %v796
    %v1673 = vunpack.c.l.b16 %v797
    %v1674 = vunpack.c.h.b16 %v797
    %v1675 = vunpack.c.l.b16 %v798
    %v1676 = vunpack.c.l.b16 %v799
    %v1677 = vunpack.c.h.b16 %v799
    %v1678 = vunpack.c.l.b16 %v800
    %v1679 = vunpack.c.h.b16 %v800
    %v1680 = vunpack.c.l.b16 %v801
    %v1681 = vunpack.c.l.b16 %v802
    %v1682 = vunpack.c.h.b16 %v802
    %v1683 = vunpack.c.l.b16 %v803
    %v1684 = vunpack.c.h.b16 %v803
    %v1685 = vunpack.c.l.b16 %v804
    %v1686 = vunpack.c.l.b16 %v805
    %v1687 = vunpack.c.h.b16 %v805
    %v1688 = vunpack.c.l.b16 %v806
    %v1689 = vunpack.c.h.b16 %v806
    %v1690 = vunpack.c.l.b16 %v807
    %v1691 = vunpack.c.l.b16 %v808
    %v1692 = vunpack.c.h.b16 %v808
    %v1693 = vunpack.c.l.b16 %v809
    %v1694 = vunpack.c.h.b16 %v809
    %v1695 = vunpack.c.l.b16 %v810
    %v1696 = vunpack.c.l.b16 %v811
    %v1697 = vunpack.c.h.b16 %v811
    %v1698 = vunpack.c.l.b16 %v812
    %v1699 = vunpack.c.h.b16 %v812
    %v1700 = vunpack.c.l.b16 %v813
    %v1701 = vunpack.c.l.b16 %v814
    %v1702 = vunpack.c.h.b16 %v814
    %v1703 = vunpack.c.l.b16 %v815
    %v1704 = vunpack.c.h.b16 %v815
    %v1705 = vunpack.c.l.b16 %v816
    %v1706 = vunpack.c.l.b16 %v817
    %v1707 = vunpack.c.h.b16 %v817
    %v1708 = vunpack.c.l.b16 %v818
    %v1709 = vunpack.c.h.b16 %v818
    %v1710 = vunpack.c.l.b16 %v819
    %v1711 = vunpack.c.l.b16 %v820
    %v1712 = vunpack.c.h.b16 %v820
    %v1713 = vunpack.c.l.b16 %v821
    %v1714 = vunpack.c.h.b16 %v821
    %v1715 = vunpack.c.l.b16 %v822
    %v1716 = vunpack.c.l.b16 %v823
    %v1717 = vunpack.c.h.b16 %v823
    %v1718 = vunpack.c.l.b16 %v824
    %v1719 = vunpack.c.h.b16 %v824
    %v1720 = vunpack.c.l.b16 %v825
    %v1721 = vunpack.c.l.b16 %v826
    %v1722 = vunpack.c.h.b16 %v826
    %v1723 = vunpack.c.l.b16 %v827
    %v1724 = vunpack.c.h.b16 %v827
    %v1725 = vunpack.c.l.b16 %v828
    %v1726 = vunpack.c.l.b16 %v829
    %v1727 = vunpack.c.h.b16 %v829
    %v1728 = vunpack.c.l.b16 %v830
    %v1729 = vunpack.c.h.b16 %v830
    %v1730 = vunpack.c.l.b16 %v831
    %v1731 = vunpack.c.l.b16 %v832
    %v1732 = vunpack.c.h.b16 %v832
    %v1733 = vunpack.c.l.b16 %v833
    %v1734 = vunpack.c.h.b16 %v833
    %v1735 = vunpack.c.l.b16 %v834
    %v1736 = vunpack.c.l.b16 %v835
    %v1737 = vunpack.c.h.b16 %v835
    %v1738 = vunpack.c.l.b16 %v836
    %v1739 = vunpack.c.h.b16 %v836
    %v1740 = vunpack.c.l.b16 %v837
    %v1741 = vunpack.c.l.b16 %v838
    %v1742 = vunpack.c.h.b16 %v838
    %v1743 = vunpack.c.l.b16 %v839
    %v1744 = vunpack.c.h.b16 %v839
    %v1745 = vunpack.c.l.b16 %v840
    %v1746 = vunpack.c.l.b16 %v841
    %v1747 = vunpack.c.h.b16 %v841
    %v1748 = vunpack.c.l.b16 %v842
    %v1749 = vunpack.c.h.b16 %v842
    %v1750 = vunpack.c.l.b16 %v843
    %v1751 = vunpack.c.l.b16 %v844
    %v1752 = vunpack.c.h.b16 %v844
    %v1753 = vunpack.c.l.b16 %v845
    %v1754 = vunpack.c.h.b16 %v845
    %v1755 = vunpack.c.l.b16 %v846
    %v1756 = vunpack.c.l.b16 %v847
    %v1757 = vunpack.c.h.b16 %v847
    %v1758 = vunpack.c.l.b16 %v848
    %v1759 = vunpack.c.h.b16 %v848
    %v1760 = vunpack.c.l.b16 %v849
    %v1761 = vunpack.c.l.b16 %v850
    %v1762 = vunpack.c.h.b16 %v850
    %v1763 = vunpack.c.l.b16 %v851
    %v1764 = vunpack.c.h.b16 %v851
    %v1765 = vunpack.c.l.b16 %v852
    %v1766 = vunpack.c.l.b16 %v853
    %v1767 = vunpack.c.h.b16 %v853
    %v1768 = vunpack.c.l.b16 %v854
    %v1769 = vunpack.c.h.b16 %v854
    %v1770 = vunpack.c.l.b16 %v855
    %v1771 = vunpack.c.l.b16 %v856
    %v1772 = vunpack.c.h.b16 %v856
    %v1773 = vunpack.c.l.b16 %v857
    %v1774 = vunpack.c.h.b16 %v857
    %v1775 = vunpack.c.l.b16 %v858
    %v1776 = vunpack.c.l.b16 %v859
    %v1777 = vunpack.c.h.b16 %v859
    %v1778 = vunpack.c.l.b16 %v860
    %v1779 = vunpack.c.h.b16 %v860
    %v1780 = vunpack.c.l.b16 %v861
    %v1781 = vunpack.c.l.b16 %v862
    %v1782 = vunpack.c.h.b16 %v862
    %v1783 = vunpack.c.l.b16 %v863
    %v1784 = vunpack.c.h.b16 %v863
    %v1785 = vunpack.c.l.b16 %v864
    %v1786 = vunpack.c.l.b16 %v865
    %v1787 = vunpack.c.h.b16 %v865
    %v1788 = vunpack.c.l.b16 %v866
    %v1789 = vunpack.c.h.b16 %v866
    %v1790 = vunpack.c.l.b16 %v867
    %v1791 = vunpack.c.l.b16 %v868
    %v1792 = vunpack.c.h.b16 %v868
    %v1793 = vunpack.c.l.b16 %v869
    %v1794 = vunpack.c.h.b16 %v869
    %v1795 = vunpack.c.l.b16 %v870
    %v1796 = vunpack.c.l.b16 %v871
    %v1797 = vunpack.c.h.b16 %v871
    %v1798 = vunpack.c.l.b16 %v872
    %v1799 = vunpack.c.h.b16 %v872
    %v1800 = vunpack.c.l.b16 %v873
    %v1801 = vunpack.c.l.b16 %v874
    %v1802 = vunpack.c.h.b16 %v874
    %v1803 = vunpack.c.l.b16 %v875
    %v1804 = vunpack.c.h.b16 %v875
    %v1805 = vunpack.c.l.b16 %v876
    %v1806 = vunpack.c.l.b16 %v877
    %v1807 = vunpack.c.h.b16 %v877
    %v1808 = vunpack.c.l.b16 %v878
    %v1809 = vunpack.c.h.b16 %v878
    %v1810 = vunpack.c.l.b16 %v879
    %v1811 = vunpack.c.l.b16 %v880
    %v1812 = vunpack.c.h.b16 %v880
    %v1813 = vunpack.c.l.b16 %v881
    %v1814 = vunpack.c.h.b16 %v881
    %v1815 = vunpack.c.l.b16 %v882
    %v1816 = vunpack.c.l.b16 %v883
    %v1817 = vunpack.c.h.b16 %v883
    %v1818 = vunpack.c.l.b16 %v884
    %v1819 = vunpack.c.h.b16 %v884
    %v1820 = vunpack.c.l.b16 %v885
    %v1821 = vunpack.c.l.b16 %v886
    %v1822 = vunpack.c.h.b16 %v886
    %v1823 = vunpack.c.l.b16 %v887
    %v1824 = vunpack.c.h.b16 %v887
    %v1825 = vunpack.c.l.b16 %v888
    %v1826 = vunpack.c.l.b16 %v889
    %v1827 = vunpack.c.h.b16 %v889
    %v1828 = vunpack.c.l.b16 %v890
    %v1829 = vunpack.c.h.b16 %v890
    %v1830 = vunpack.c.l.b16 %v891
    %v1831 = vunpack.c.l.b16 %v892
    %v1832 = vunpack.c.h.b16 %v892
    %v1833 = vunpack.c.l.b16 %v893
    %v1834 = vunpack.c.h.b16 %v893
    %v1835 = vunpack.c.l.b16 %v894
    %v1836 = vunpack.c.l.b16 %v895
    %v1837 = vunpack.c.h.b16 %v895
    %v1838 = vunpack.c.l.b16 %v896
    %v1839 = vunpack.c.h.b16 %v896
    %v1840 = vunpack.c.l.b16 %v897
    %v1841 = vunpack.c.l.b16 %v898
    %v1842 = vunpack.c.h.b16 %v898
    %v1843 = vunpack.c.l.b16 %v899
    %v1844 = vunpack.c.h.b16 %v899
    %v1845 = vunpack.c.l.b16 %v900
    %v1846 = vunpack.c.l.b16 %v901
    %v1847 = vunpack.c.h.b16 %v901
    %v1848 = vunpack.c.l.b16 %v902
    %v1849 = vunpack.c.h.b16 %v902
    %v1850 = vunpack.c.l.b16 %v903
    %v1851 = vunpack.c.l.b16 %v904
    %v1852 = vunpack.c.h.b16 %v904
    %v1853 = vunpack.c.l.b16 %v905
    %v1854 = vunpack.c.h.b16 %v905
    %v1855 = vunpack.c.l.b16 %v906
    %v1856 = vunpack.c.l.b16 %v907
    %v1857 = vunpack.c.h.b16 %v907
    %v1858 = vunpack.c.l.b16 %v908
    %v1859 = vunpack.c.h.b16 %v908
    %v1860 = vunpack.c.l.b16 %v909
    %v1861 = vunpack.c.l.b16 %v910
    %v1862 = vunpack.c.h.b16 %v910
    %v1863 = vunpack.c.l.b16 %v911
    %v1864 = vunpack.c.h.b16 %v911
    %v1865 = vunpack.c.l.b16 %v912
    %v1866 = vunpack.c.l.b16 %v913
    %v1867 = vunpack.c.h.b16 %v913
    %v1868 = vunpack.c.l.b16 %v914
    %v1869 = vunpack.c.h.b16 %v914
    %v1870 = vunpack.c.l.b16 %v915
    %v1871 = vunpack.c.l.b16 %v916
    %v1872 = vunpack.c.h.b16 %v916
    %v1873 = vunpack.c.l.b16 %v917
    %v1874 = vunpack.c.h.b16 %v917
    %v1875 = vunpack.c.l.b16 %v918
    %v1876 = vunpack.c.l.b16 %v919
    %v1877 = vunpack.c.h.b16 %v919
    %v1878 = vunpack.c.l.b16 %v920
    %v1879 = vunpack.c.h.b16 %v920
    %v1880 = vunpack.c.l.b16 %v921
    %v1881 = vunpack.c.l.b16 %v922
    %v1882 = vunpack.c.h.b16 %v922
    %v1883 = vunpack.c.l.b16 %v923
    %v1884 = vunpack.c.h.b16 %v923
    %v1885 = vunpack.c.l.b16 %v924
    %v1886 = vunpack.c.l.b16 %v925
    %v1887 = vunpack.c.h.b16 %v925
    %v1888 = vunpack.c.l.b16 %v926
    %v1889 = vunpack.c.h.b16 %v926
    %v1890 = vunpack.c.l.b16 %v927
    %v1891 = vunpack.c.l.b16 %v928
    %v1892 = vunpack.c.h.b16 %v928
    %v1893 = vunpack.c.l.b16 %v929
    %v1894 = vunpack.c.h.b16 %v929
    %v1895 = vunpack.c.l.b16 %v930
    %v1896 = vunpack.c.l.b16 %v931
    %v1897 = vunpack.c.h.b16 %v931
    %v1898 = vunpack.c.l.b16 %v932
    %v1899 = vunpack.c.h.b16 %v932
    %v1900 = vunpack.c.l.b16 %v933
    %v1901 = vunpack.c.l.b16 %v934
    %v1902 = vunpack.c.h.b16 %v934
    %v1903 = vunpack.c.l.b16 %v935
    %v1904 = vunpack.c.h.b16 %v935
    %v1905 = vunpack.c.l.b16 %v936
    %v1906 = vunpack.c.l.b16 %v937
    %v1907 = vunpack.c.h.b16 %v937
    %v1908 = vunpack.c.l.b16 %v938
    %v1909 = vunpack.c.h.b16 %v938
    %v1910 = vunpack.c.l.b16 %v939
    %v1911 = vunpack.c.l.b16 %v940
    %v1912 = vunpack.c.h.b16 %v940
    %v1913 = vunpack.c.l.b16 %v941
    %v1914 = vunpack.c.h.b16 %v941
    %v1915 = vunpack.c.l.b16 %v942
    %v1916 = vunpack.c.l.b16 %v943
    %v1917 = vunpack.c.h.b16 %v943
    %v1918 = vunpack.c.l.b16 %v944
    %v1919 = vunpack.c.h.b16 %v944
    %v1920 = vunpack.c.l.b16 %v945
    %v1921 = vunpack.c.l.b16 %v946
    %v1922 = vunpack.c.h.b16 %v946
    %v1923 = vunpack.c.l.b16 %v947
    %v1924 = vunpack.c.h.b16 %v947
    %v1925 = vunpack.c.l.b16 %v948
    %v1926 = vunpack.c.l.b16 %v949
    %v1927 = vunpack.c.h.b16 %v949
    %v1928 = vunpack.c.l.b16 %v950
    %v1929 = vunpack.c.h.b16 %v950
    %v1930 = vunpack.c.l.b16 %v951
    %v1931 = vunpack.c.l.b16 %v952
    %v1932 = vunpack.c.h.b16 %v952
    %v1933 = vunpack.c.l.b16 %v953
    %v1934 = vunpack.c.h.b16 %v953
    %v1935 = vunpack.c.l.b16 %v954
    %v1936 = vunpack.c.l.b16 %v955
    %v1937 = vunpack.c.h.b16 %v955
    %v1938 = vunpack.c.l.b16 %v956
    %v1939 = vunpack.c.h.b16 %v956
    %v1940 = vunpack.c.l.b16 %v957
    %v1941 = vunpack.c.l.b16 %v958
    %v1942 = vunpack.c.h.b16 %v958
    %v1943 = vunpack.c.l.b16 %v959
    %v1944 = vunpack.c.h.b16 %v959
    %v1945 = vunpack.c.l.b16 %v960
    %v1946 = vunpack.c.l.b16 %v961
    %v1947 = vunpack.c.h.b16 %v961
    %v1948 = vunpack.c.l.b16 %v962
    %v1949 = vunpack.c.h.b16 %v962
    %v1950 = vunpack.c.l.b16 %v963
    %v1951 = vunpack.c.l.b16 %v964
    %v1952 = vunpack.c.h.b16 %v964
    %v1953 = vunpack.c.l.b16 %v965
    %v1954 = vunpack.c.h.b16 %v965
    %v1955 = vunpack.c.l.b16 %v966
    %v1956 = vunpack.c.l.b16 %v967
    %v1957 = vunpack.c.h.b16 %v967
    %v1958 = vunpack.c.l.b16 %v968
    %v1959 = vunpack.c.h.b16 %v968
    %v1960 = vunpack.c.l.b16 %v969
    %v1961 = vunpack.c.l.b16 %v970
    %v1962 = vunpack.c.h.b16 %v970
    %v1963 = vunpack.c.l.b16 %v971
    %v1964 = vunpack.c.h.b16 %v971
    %v1965 = vunpack.c.l.b16 %v972
    %v1966 = vunpack.c.l.b16 %v973
    %v1967 = vunpack.c.h.b16 %v973
    %v1968 = vunpack.c.l.b16 %v974
    %v1969 = vunpack.c.h.b16 %v974
    %v1970 = vunpack.c.l.b16 %v975
    %v1971 = vunpack.c.l.b16 %v976
    %v1972 = vunpack.c.h.b16 %v976
    %v1973 = vunpack.c.l.b16 %v977
    %v1974 = vunpack.c.h.b16 %v977
    %v1975 = vunpack.c.l.b16 %v978
    %v1976 = vunpack.c.l.b16 %v979
    %v1977 = vunpack.c.h.b16 %v979
    %v1978 = vunpack.c.l.b16 %v980
    %v1979 = vunpack.c.h.b16 %v980
    %v1980 = vunpack.c.l.b16 %v981
    %v1981 = vunpack.c.l.b16 %v982
    %v1982 = vunpack.c.h.b16 %v982
    %v1983 = vunpack.c.l.b16 %v983
    %v1984 = vunpack.c.h.b16 %v983
    %v1985 = vunpack.c.l.b16 %v984
    %v1986 = vunpack.c.l.b16 %v985
    %v1987 = vunpack.c.h.b16 %v985
    %v1988 = vunpack.c.l.b16 %v986
    %v1989 = vunpack.c.h.b16 %v986
    %v1990 = vunpack.c.l.b16 %v987
    %v1991 = vunpack.c.l.b16 %v988
    %v1992 = vunpack.c.h.b16 %v988
    %v1993 = vunpack.c.l.b16 %v989
    %v1994 = vunpack.c.h.b16 %v989
    %v1995 = vunpack.c.l.b16 %v990
    %v1996 = vunpack.c.l.b16 %v991
    %v1997 = vunpack.c.h.b16 %v991
    %v1998 = vunpack.c.l.b16 %v992
    %v1999 = vunpack.c.h.b16 %v992
    %v2000 = vunpack.c.l.b16 %v993
    %v2001 = vunpack.c.l.b16 %v994
    %v2002 = vunpack.c.h.b16 %v994
    %v2003 = vunpack.c.l.b16 %v995
    %v2004 = vunpack.c.h.b16 %v995
    %v2005 = vunpack.c.l.b16 %v996
    %v2006 = vunpack.c.l.b16 %v997
    %v2007 = vunpack.c.h.b16 %v997
    %v2008 = vunpack.c.l.b16 %v998
    %v2009 = vunpack.c.h.b16 %v998
    %v2010 = vunpack.c.l.b16 %v999
    %v2011 = vunpack.c.l.b16 %v1000
    %v2012 = vunpack.c.h.b16 %v1000
    %v2013 = vunpack.c.l.b16 %v1001
    %v2014 = vunpack.c.h.b16 %v1001
    %v2015 = vunpack.c.l.b16 %v1002
    %v2016 = vunpack.c.l.b16 %v1003
    %v2017 = vunpack.c.h.b16 %v1003
    %v2018 = vunpack.c.l.b16 %v1004
    %v2019 = vunpack.c.h.b16 %v1004
    %v2020 = vunpack.c.l.b16 %v1005
    %v2021 = vunpack.c.l.b16 %v1006
    %v2022 = vunpack.c.h.b16 %v1006
    %v2023 = vunpack.c.l.b16 %v1007
    %v2024 = vunpack.c.h.b16 %v1007
    %v2025 = vunpack.c.l.b16 %v1008
    %v2026 = vunpack.c.l.b16 %v1009
    %v2027 = vunpack.c.h.b16 %v1009
    %v2028 = vunpack.c.l.b16 %v1010
    %v2029 = vunpack.c.h.b16 %v1010
    %v2030 = vunpack.c.l.b16 %v1011
    %v2031 = vunpack.c.l.b16 %v1012
    %v2032 = vunpack.c.h.b16 %v1012
    %v2033 = vunpack.c.l.b16 %v1013
    %v2034 = vunpack.c.h.b16 %v1013
    %v2035 = vunpack.c.l.b16 %v1014
    %v2036 = vunpack.c.l.b16 %v1015
    %v2037 = vunpack.c.h.b16 %v1015
    %v2038 = vunpack.c.l.b16 %v1016
    %v2039 = vunpack.c.h.b16 %v1016
    %v2040 = vunpack.c.l.b16 %v1017
    %v2041 = vunpack.c.l.b16 %v1018
    %v2042 = vunpack.c.h.b16 %v1018
    %v2043 = vunpack.c.l.b16 %v1019
    %v2044 = vunpack.c.h.b16 %v1019
    %v2045 = vunpack.c.l.b16 %v1020
    %v2046 = vunpack.c.l.b16 %v1021
    %v2047 = vunpack.c.h.b16 %v1021
    %v2048 = vunpack.c.l.b16 %v1022
    %v2049 = vunpack.c.h.b16 %v1022
    %v2050 = vunpack.c.l.b16 %v1023
    %v2051 = vunpack.c.l.b16 %v1024
    %v2052 = vunpack.c.h.b16 %v1024
    %v2053 = vunpack.c.l.b16 %v1025
    %v2054 = vunpack.c.h.b16 %v1025
    %v2055 = vunpack.c.l.b16 %v1026
    %v2056 = vunpack.c.l.b16 %v1027
    %v2057 = vunpack.c.h.b16 %v1027
    %v2058 = vunpack.c.l.b16 %v1028
    %v2059 = vunpack.c.h.b16 %v1028
    %v2060 = vunpack.c.l.b16 %v1029
    %v2061 = vunpack.c.l.b16 %v1030
    %v2062 = vunpack.c.h.b16 %v1030
    %v2063 = vunpack.c.l.b16 %v1031
    %v2064 = vunpack.c.h.b16 %v1031
    %v2065 = vunpack.c.l.b16 %v1032
    %v2066 = vunpack.c.l.b16 %v1033
    %v2067 = vunpack.c.h.b16 %v1033
    %v2068 = vunpack.c.l.b16 %v1034
    %v2069 = vunpack.c.h.b16 %v1034
    %v2070 = vunpack.c.l.b16 %v1035
    %v2071 = vpack.c.b16 %v1436, %v1431
    %v2072 = vpack.c.b16 %v1437, %v1432
    %v2073 = vpack.c.b16 %v1438, %v1433
    %v2074 = vpack.c.b16 %v1439, %v1434
    %v2075 = vpack.c.b16 %v1440, %v1435
    %v2076 = vpack.c.b16 %v1446, %v1441
    %v2077 = vpack.c.b16 %v1447, %v1442
    %v2078 = vpack.c.b16 %v1448, %v1443
    %v2079 = vpack.c.b16 %v1449, %v1444
    %v2080 = vpack.c.b16 %v1450, %v1445
    %v2081 = vpack.c.b16 %v1456, %v1451
    %v2082 = vpack.c.b16 %v1457, %v1452
    %v2083 = vpack.c.b16 %v1458, %v1453
    %v2084 = vpack.c.b16 %v1459, %v1454
    %v2085 = vpack.c.b16 %v1460, %v1455
    %v2086 = vpack.c.b16 %v1466, %v1461
    %v2087 = vpack.c.b16 %v1467, %v1462
    %v2088 = vpack.c.b16 %v1468, %v1463
    %v2089 = vpack.c.b16 %v1469, %v1464
    %v2090 = vpack.c.b16 %v1470, %v1465
    %v2091 = vpack.c.b16 %v1476, %v1471
    %v2092 = vpack.c.b16 %v1477, %v1472
    %v2093 = vpack.c.b16 %v1478, %v1473
    %v2094 = vpack.c.b16 %v1479, %v1474
    %v2095 = vpack.c.b16 %v1480, %v1475
    %v2096 = vpack.c.b16 %v1486, %v1481
    %v2097 = vpack.c.b16 %v1487, %v1482
    %v2098 = vpack.c.b16 %v1488, %v1483
    %v2099 = vpack.c.b16 %v1489, %v1484
    %v2100 = vpack.c.b16 %v1490, %v1485
    %v2101 = vpack.c.b16 %v1496, %v1491
    %v2102 = vpack.c.b16 %v1497, %v1492
    %v2103 = vpack.c.b16 %v1498, %v1493
    %v2104 = vpack.c.b16 %v1499, %v1494
    %v2105 = vpack.c.b16 %v1500, %v1495
    %v2106 = vpack.c.b16 %v1506, %v1501
    %v2107 = vpack.c.b16 %v1507, %v1502
    %v2108 = vpack.c.b16 %v1508, %v1503
    %v2109 = vpack.c.b16 %v1509, %v1504
    %v2110 = vpack.c.b16 %v1510, %v1505
    %v2111 = vpack.c.b16 %v1516, %v1511
    %v2112 = vpack.c.b16 %v1517, %v1512
    %v2113 = vpack.c.b16 %v1518, %v1513
    %v2114 = vpack.c.b16 %v1519, %v1514
    %v2115 = vpack.c.b16 %v1520, %v1515
    %v2116 = vpack.c.b16 %v1526, %v1521
    %v2117 = vpack.c.b16 %v1527, %v1522
    %v2118 = vpack.c.b16 %v1528, %v1523
    %v2119 = vpack.c.b16 %v1529, %v1524
    %v2120 = vpack.c.b16 %v1530, %v1525
    %v2121 = vpack.c.b16 %v1536, %v1531
    %v2122 = vpack.c.b16 %v1537, %v1532
    %v2123 = vpack.c.b16 %v1538, %v1533
    %v2124 = vpack.c.b16 %v1539, %v1534
    %v2125 = vpack.c.b16 %v1540, %v1535
    %v2126 = vpack.c.b16 %v1546, %v1541
    %v2127 = vpack.c.b16 %v1547, %v1542
    %v2128 = vpack.c.b16 %v1548, %v1543
    %v2129 = vpack.c.b16 %v1549, %v1544
    %v2130 = vpack.c.b16 %v1550, %v1545
    %v2131 = vpack.c.b16 %v1556, %v1551
    %v2132 = vpack.c.b16 %v1557, %v1552
    %v2133 = vpack.c.b16 %v1558, %v1553
    %v2134 = vpack.c.b16 %v1559, %v1554
    %v2135 = vpack.c.b16 %v1560, %v1555
    %v2136 = vpack.c.b16 %v1566, %v1561
    %v2137 = vpack.c.b16 %v1567, %v1562
    %v2138 = vpack.c.b16 %v1568, %v1563
    %v2139 = vpack.c.b16 %v1569, %v1564
    %v2140 = vpack.c.b16 %v1570, %v1565
    %v2141 = vpack.c.b16 %v1576, %v1571
    %v2142 = vpack.c.b16 %v1577, %v1572
    %v2143 = vpack.c.b16 %v1578, %v1573
    %v2144 = vpack.c.b16 %v1579, %v1574
    %v2145 = vpack.c.b16 %v1580, %v1575
    %v2146 = vpack.c.b16 %v1586, %v1581
    %v2147 = vpack.c.b16 %v1587, %v1582
    %v2148 = vpack.c.b16 %v1588, %v1583
    %v2149 = vpack.c.b16 %v1589, %v1584
    %v2150 = vpack.c.b16 %v1590, %v1585
    %v2151 = vpack.c.b16 %v1596, %v1591
    %v2152 = vpack.c.b16 %v1597, %v1592
    %v2153 = vpack.c.b16 %v1598, %v1593
    %v2154 = vpack.c.b16 %v1599, %v1594
    %v2155 = vpack.c.b16 %v1600, %v1595
    %v2156 = vpack.c.b16 %v1606, %v1601
    %v2157 = vpack.c.b16 %v1607, %v1602
    %v2158 = vpack.c.b16 %v1608, %v1603
    %v2159 = vpack.c.b16 %v1609, %v1604
    %v2160 = vpack.c.b16 %v1610, %v1605
    %v2161 = vpack.c.b16 %v1616, %v1611
    %v2162 = vpack.c.b16 %v1617, %v1612
    %v2163 = vpack.c.b16 %v1618, %v1613
    %v2164 = vpack.c.b16 %v1619, %v1614
    %v2165 = vpack.c.b16 %v1620, %v1615
    %v2166 = vpack.c.b16 %v1626, %v1621
    %v2167 = vpack.c.b16 %v1627, %v1622
    %v2168 = vpack.c.b16 %v1628, %v1623
    %v2169 = vpack.c.b16 %v1629, %v1624
    %v2170 = vpack.c.b16 %v1630, %v1625
    %v2171 = vpack.c.b16 %v1636, %v1631
    %v2172 = vpack.c.b16 %v1637, %v1632
    %v2173 = vpack.c.b16 %v1638, %v1633
    %v2174 = vpack.c.b16 %v1639, %v1634
    %v2175 = vpack.c.b16 %v1640, %v1635
    %v2176 = vpack.c.b16 %v1646, %v1641
    %v2177 = vpack.c.b16 %v1647, %v1642
    %v2178 = vpack.c.b16 %v1648, %v1643
    %v2179 = vpack.c.b16 %v1649, %v1644
    %v2180 = vpack.c.b16 %v1650, %v1645
    %v2181 = vpack.c.b16 %v1656, %v1651
    %v2182 = vpack.c.b16 %v1657, %v1652
    %v2183 = vpack.c.b16 %v1658, %v1653
    %v2184 = vpack.c.b16 %v1659, %v1654
    %v2185 = vpack.c.b16 %v1660, %v1655
    %v2186 = vpack.c.b16 %v1666, %v1661
    %v2187 = vpack.c.b16 %v1667, %v1662
    %v2188 = vpack.c.b16 %v1668, %v1663
    %v2189 = vpack.c.b16 %v1669, %v1664
    %v2190 = vpack.c.b16 %v1670, %v1665
    %v2191 = vpack.c.b16 %v1676, %v1671
    %v2192 = vpack.c.b16 %v1677, %v1672
    %v2193 = vpack.c.b16 %v1678, %v1673
    %v2194 = vpack.c.b16 %v1679, %v1674
    %v2195 = vpack.c.b16 %v1680, %v1675
    %v2196 = vpack.c.b16 %v1686, %v1681
    %v2197 = vpack.c.b16 %v1687, %v1682
    %v2198 = vpack.c.b16 %v1688, %v1683
    %v2199 = vpack.c.b16 %v1689, %v1684
    %v2200 = vpack.c.b16 %v1690, %v1685
    %v2201 = vpack.c.b16 %v1696, %v1691
    %v2202 = vpack.c.b16 %v1697, %v1692
    %v2203 = vpack.c.b16 %v1698, %v1693
    %v2204 = vpack.c.b16 %v1699, %v1694
    %v2205 = vpack.c.b16 %v1700, %v1695
    %v2206 = vpack.c.b16 %v1706, %v1701
    %v2207 = vpack.c.b16 %v1707, %v1702
    %v2208 = vpack.c.b16 %v1708, %v1703
    %v2209 = vpack.c.b16 %v1709, %v1704
    %v2210 = vpack.c.b16 %v1710, %v1705
    %v2211 = vpack.c.b16 %v1716, %v1711
    %v2212 = vpack.c.b16 %v1717, %v1712
    %v2213 = vpack.c.b16 %v1718, %v1713
    %v2214 = vpack.c.b16 %v1719, %v1714
    %v2215 = vpack.c.b16 %v1720, %v1715
    %v2216 = vpack.c.b16 %v1726, %v1721
    %v2217 = vpack.c.b16 %v1727, %v1722
    %v2218 = vpack.c.b16 %v1728, %v1723
    %v2219 = vpack.c.b16 %v1729, %v1724
    %v2220 = vpack.c.b16 %v1730, %v1725
    %v2221 = vpack.c.b16 %v1736, %v1731
    %v2222 = vpack.c.b16 %v1737, %v1732
    %v2223 = vpack.c.b16 %v1738, %v1733
    %v2224 = vpack.c.b16 %v1739, %v1734
    %v2225 = vpack.c.b16 %v1740, %v1735
    %v2226 = vpack.c.b16 %v1746, %v1741
    %v2227 = vpack.c.b16 %v1747, %v1742
    %v2228 = vpack.c.b16 %v1748, %v1743
    %v2229 = vpack.c.b16 %v1749, %v1744
    %v2230 = vpack.c.b16 %v1750, %v1745
    %v2231 = vpack.c.b16 %v1756, %v1751
    %v2232 = vpack.c.b16 %v1757, %v1752
    %v2233 = vpack.c.b16 %v1758, %v1753
    %v2234 = vpack.c.b16 %v1759, %v1754
    %v2235 = vpack.c.b16 %v1760, %v1755
    %v2236 = vpack.c.b16 %v1766, %v1761
    %v2237 = vpack.c.b16 %v1767, %v1762
    %v2238 = vpack.c.b16 %v1768, %v1763
    %v2239 = vpack.c.b16 %v1769, %v1764
    %v2240 = vpack.c.b16 %v1770, %v1765
    %v2241 = vpack.c.b16 %v1776, %v1771
    %v2242 = vpack.c.b16 %v1777, %v1772
    %v2243 = vpack.c.b16 %v1778, %v1773
    %v2244 = vpack.c.b16 %v1779, %v1774
    %v2245 = vpack.c.b16 %v1780, %v1775
    %v2246 = vpack.c.b16 %v1786, %v1781
    %v2247 = vpack.c.b16 %v1787, %v1782
    %v2248 = vpack.c.b16 %v1788, %v1783
    %v2249 = vpack.c.b16 %v1789, %v1784
    %v2250 = vpack.c.b16 %v1790, %v1785
    %v2251 = vpack.c.b16 %v1796, %v1791
    %v2252 = vpack.c.b16 %v1797, %v1792
    %v2253 = vpack.c.b16 %v1798, %v1793
    %v2254 = vpack.c.b16 %v1799, %v1794
    %v2255 = vpack.c.b16 %v1800, %v1795
    %v2256 = vpack.c.b16 %v1806, %v1801
    %v2257 = vpack.c.b16 %v1807, %v1802
    %v2258 = vpack.c.b16 %v1808, %v1803
    %v2259 = vpack.c.b16 %v1809, %v1804
    %v2260 = vpack.c.b16 %v1810, %v1805
    %v2261 = vpack.c.b16 %v1816, %v1811
    %v2262 = vpack.c.b16 %v1817, %v1812
    %v2263 = vpack.c.b16 %v1818, %v1813
    %v2264 = vpack.c.b16 %v1819, %v1814
    %v2265 = vpack.c.b16 %v1820, %v1815
    %v2266 = vpack.c.b16 %v1826, %v1821
    %v2267 = vpack.c.b16 %v1827, %v1822
    %v2268 = vpack.c.b16 %v1828, %v1823
    %v2269 = vpack.c.b16 %v1829, %v1824
    %v2270 = vpack.c.b16 %v1830, %v1825
    %v2271 = vpack.c.b16 %v1836, %v1831
    %v2272 = vpack.c.b16 %v1837, %v1832
    %v2273 = vpack.c.b16 %v1838, %v1833
    %v2274 = vpack.c.b16 %v1839, %v1834
    %v2275 = vpack.c.b16 %v1840, %v1835
    %v2276 = vpack.c.b16 %v1846, %v1841
    %v2277 = vpack.c.b16 %v1847, %v1842
    %v2278 = vpack.c.b16 %v1848, %v1843
    %v2279 = vpack.c.b16 %v1849, %v1844
    %v2280 = vpack.c.b16 %v1850, %v1845
    %v2281 = vpack.c.b16 %v1856, %v1851
    %v2282 = vpack.c.b16 %v1857, %v1852
    %v2283 = vpack.c.b16 %v1858, %v1853
    %v2284 = vpack.c.b16 %v1859, %v1854
    %v2285 = vpack.c.b16 %v1860, %v1855
    %v2286 = vpack.c.b16 %v1866, %v1861
    %v2287 = vpack.c.b16 %v1867, %v1862
    %v2288 = vpack.c.b16 %v1868, %v1863
    %v2289 = vpack.c.b16 %v1869, %v1864
    %v2290 = vpack.c.b16 %v1870, %v1865
    %v2291 = vpack.c.b16 %v1876, %v1871
    %v2292 = vpack.c.b16 %v1877, %v1872
    %v2293 = vpack.c.b16 %v1878, %v1873
    %v2294 = vpack.c.b16 %v1879, %v1874
    %v2295 = vpack.c.b16 %v1880, %v1875
    %v2296 = vpack.c.b16 %v1886, %v1881
    %v2297 = vpack.c.b16 %v1887, %v1882
    %v2298 = vpack.c.b16 %v1888, %v1883
    %v2299 = vpack.c.b16 %v1889, %v1884
    %v2300 = vpack.c.b16 %v1890, %v1885
    %v2301 = vpack.c.b16 %v1896, %v1891
    %v2302 = vpack.c.b16 %v1897, %v1892
    %v2303 = vpack.c.b16 %v1898, %v1893
    %v2304 = vpack.c.b16 %v1899, %v1894
    %v2305 = vpack.c.b16 %v1900, %v1895
    %v2306 = vpack.c.b16 %v1906, %v1901
    %v2307 = vpack.c.b16 %v1907, %v1902
    %v2308 = vpack.c.b16 %v1908, %v1903
    %v2309 = vpack.c.b16 %v1909, %v1904
    %v2310 = vpack.c.b16 %v1910, %v1905
    %v2311 = vpack.c.b16 %v1916, %v1911
    %v2312 = vpack.c.b16 %v1917, %v1912
    %v2313 = vpack.c.b16 %v1918, %v1913
    %v2314 = vpack.c.b16 %v1919, %v1914
    %v2315 = vpack.c.b16 %v1920, %v1915
    %v2316 = vpack.c.b16 %v1926, %v1921
    %v2317 = vpack.c.b16 %v1927, %v1922
    %v2318 = vpack.c.b16 %v1928, %v1923
    %v2319 = vpack.c.b16 %v1929, %v1924
    %v2320 = vpack.c.b16 %v1930, %v1925
    %v2321 = vpack.c.b16 %v1936, %v1931
    %v2322 = vpack.c.b16 %v1937, %v1932
    %v2323 = vpack.c.b16 %v1938, %v1933
    %v2324 = vpack.c.b16 %v1939, %v1934
    %v2325 = vpack.c.b16 %v1940, %v1935
    %v2326 = vpack.c.b16 %v1946, %v1941
    %v2327 = vpack.c.b16 %v1947, %v1942
    %v2328 = vpack.c.b16 %v1948, %v1943
    %v2329 = vpack.c.b16 %v1949, %v1944
    %v2330 = vpack.c.b16 %v1950, %v1945
    %v2331 = vpack.c.b16 %v1956, %v1951
    %v2332 = vpack.c.b16 %v1957, %v1952
    %v2333 = vpack.c.b16 %v1958, %v1953
    %v2334 = vpack.c.b16 %v1959, %v1954
    %v2335 = vpack.c.b16 %v1960, %v1955
    %v2336 = vpack.c.b16 %v1966, %v1961
    %v2337 = vpack.c.b16 %v1967, %v1962
    %v2338 = vpack.c.b16 %v1968, %v1963
    %v2339 = vpack.c.b16 %v1969, %v1964
    %v2340 = vpack.c.b16 %v1970, %v1965
    %v2341 = vpack.c.b16 %v1976, %v1971
    %v2342 = vpack.c.b16 %v1977, %v1972
    %v2343 = vpack.c.b16 %v1978, %v1973
    %v2344 = vpack.c.b16 %v1979, %v1974
    %v2345 = vpack.c.b16 %v1980, %v1975
    %v2346 = vpack.c.b16 %v1986, %v1981
    %v2347 = vpack.c.b16 %v1987, %v1982
    %v2348 = vpack.c.b16 %v1988, %v1983
    %v2349 = vpack.c.b16 %v1989, %v1984
    %v2350 = vpack.c.b16 %v1990, %v1985
    %v2351 = vpack.c.b16 %v1996, %v1991
    %v2352 = vpack.c.b16 %v1997, %v1992
    %v2353 = vpack.c.b16 %v1998, %v1993
    %v2354 = vpack.c.b16 %v1999, %v1994
    %v2355 = vpack.c.b16 %v2000, %v1995
    %v2356 = vpack.c.b16 %v2006, %v2001
    %v2357 = vpack.c.b16 %v2007, %v2002
    %v2358 = vpack.c.b16 %v2008, %v2003
    %v2359 = vpack.c.b16 %v2009, %v2004
    %v2360 = vpack.c.b16 %v2010, %v2005
    %v2361 = vpack.c.b16 %v2016, %v2011
    %v2362 = vpack.c.b16 %v2017, %v2012
    %v2363 = vpack.c.b16 %v2018, %v2013
    %v2364 = vpack.c.b16 %v2019, %v2014
    %v2365 = vpack.c.b16 %v2020, %v2015
    %v2366 = vpack.c.b16 %v2026, %v2021
    %v2367 = vpack.c.b16 %v2027, %v2022
    %v2368 = vpack.c.b16 %v2028, %v2023
    %v2369 = vpack.c.b16 %v2029, %v2024
    %v2370 = vpack.c.b16 %v2030, %v2025
    %v2371 = vpack.c.b16 %v2036, %v2031
    %v2372 = vpack.c.b16 %v2037, %v2032
    %v2373 = vpack.c.b16 %v2038, %v2033
    %v2374 = vpack.c.b16 %v2039, %v2034
    %v2375 = vpack.c.b16 %v2040, %v2035
    %v2376 = vpack.c.b16 %v2046, %v2041
    %v2377 = vpack.c.b16 %v2047, %v2042
    %v2378 = vpack.c.b16 %v2048, %v2043
    %v2379 = vpack.c.b16 %v2049, %v2044
    %v2380 = vpack.c.b16 %v2050, %v2045
    %v2381 = vpack.c.b16 %v2056, %v2051
    %v2382 = vpack.c.b16 %v2057, %v2052
    %v2383 = vpack.c.b16 %v2058, %v2053
    %v2384 = vpack.c.b16 %v2059, %v2054
    %v2385 = vpack.c.b16 %v2060, %v2055
    %v2386 = vpack.c.b16 %v2066, %v2061
    %v2387 = vpack.c.b16 %v2067, %v2062
    %v2388 = vpack.c.b16 %v2068, %v2063
    %v2389 = vpack.c.b16 %v2069, %v2064
    %v2390 = vpack.c.b16 %v2070, %v2065
    %2711 = vmatpush.bf16.msra.mxu0 %v2106
    %2712 = vmatpush.bf16.msra.mxu0 %v2101
    %2713 = vmatpush.bf16.msra.mxu0 %v2096
    %2714 = vmatpush.bf16.msra.mxu0 %v2091
    %2715 = vmatpush.bf16.msra.mxu0 %v2086
    %2716 = vmatpush.bf16.msra.mxu0 %v2081
    %2717 = vmatpush.bf16.msra.mxu0 %v2076
    %2718 = vmatpush.bf16.msra.mxu0 %v2071
    %2719 = vmatmul.bf16.gmra.mxu0 %v644
    %v2720 = vpop.f32.mrf.mxu0
    %v2721 = vadd.f32 %v1037, %v2720
    %v2722 = vpop.f32.mrf.mxu0
    %2723 = vdwg.mxu0
    %2724 = vmatpush.bf16.msra.mxu0 %v2146
    %2725 = vmatpush.bf16.msra.mxu0 %v2141
    %2726 = vmatpush.bf16.msra.mxu0 %v2136
    %2727 = vmatpush.bf16.msra.mxu0 %v2131
    %2728 = vmatpush.bf16.msra.mxu0 %v2126
    %2729 = vmatpush.bf16.msra.mxu0 %v2121
    %2730 = vmatpush.bf16.msra.mxu0 %v2116
    %2731 = vmatpush.bf16.msra.mxu0 %v2111
    %2732 = vmatmul.bf16.gmra.mxu0 %v645
    %v2733 = vpop.f32.mrf.mxu0
    %v2734 = vadd.f32 %v2721, %v2733
    %v2735 = vpop.f32.mrf.mxu0
    %2736 = vdwg.mxu0
    %2737 = vmatpush.bf16.msra.mxu0 %v2186
    %2738 = vmatpush.bf16.msra.mxu0 %v2181
    %2739 = vmatpush.bf16.msra.mxu0 %v2176
    %2740 = vmatpush.bf16.msra.mxu0 %v2171
    %2741 = vmatpush.bf16.msra.mxu0 %v2166
    %2742 = vmatpush.bf16.msra.mxu0 %v2161
    %2743 = vmatpush.bf16.msra.mxu0 %v2156
    %2744 = vmatpush.bf16.msra.mxu0 %v2151
    %2745 = vmatmul.bf16.gmra.mxu0 %v646
    %v2746 = vpop.f32.mrf.mxu0
    %v2747 = vadd.f32 %v2734, %v2746
    %v2748 = vpop.f32.mrf.mxu0
    %2749 = vdwg.mxu0
    %2750 = vmatpush.bf16.msra.mxu0 %v2226
    %2751 = vmatpush.bf16.msra.mxu0 %v2221
    %2752 = vmatpush.bf16.msra.mxu0 %v2216
    %2753 = vmatpush.bf16.msra.mxu0 %v2211
    %2754 = vmatpush.bf16.msra.mxu0 %v2206
    %2755 = vmatpush.bf16.msra.mxu0 %v2201
    %2756 = vmatpush.bf16.msra.mxu0 %v2196
    %2757 = vmatpush.bf16.msra.mxu0 %v2191
    %2758 = vmatmul.bf16.gmra.mxu0 %v647
    %v2759 = vpop.f32.mrf.mxu0
    %v2760 = vadd.f32 %v2747, %v2759
    %v2761 = vpop.f32.mrf.mxu0
    %2762 = vdwg.mxu0
    %2763 = vmatpush.bf16.msra.mxu0 %v2266
    %2764 = vmatpush.bf16.msra.mxu0 %v2261
    %2765 = vmatpush.bf16.msra.mxu0 %v2256
    %2766 = vmatpush.bf16.msra.mxu0 %v2251
    %2767 = vmatpush.bf16.msra.mxu0 %v2246
    %2768 = vmatpush.bf16.msra.mxu0 %v2241
    %2769 = vmatpush.bf16.msra.mxu0 %v2236
    %2770 = vmatpush.bf16.msra.mxu0 %v2231
    %2771 = vmatmul.bf16.gmra.mxu0 %v648
    %v2772 = vpop.f32.mrf.mxu0
    %v2773 = vadd.f32 %v2760, %v2772
    %v2774 = vpop.f32.mrf.mxu0
    %2775 = vdwg.mxu0
    %2776 = vmatpush.bf16.msra.mxu0 %v2306
    %2777 = vmatpush.bf16.msra.mxu0 %v2301
    %2778 = vmatpush.bf16.msra.mxu0 %v2296
    %2779 = vmatpush.bf16.msra.mxu0 %v2291
    %2780 = vmatpush.bf16.msra.mxu0 %v2286
    %2781 = vmatpush.bf16.msra.mxu0 %v2281
    %2782 = vmatpush.bf16.msra.mxu0 %v2276
    %2783 = vmatpush.bf16.msra.mxu0 %v2271
    %2784 = vmatmul.bf16.gmra.mxu0 %v649
    %v2785 = vpop.f32.mrf.mxu0
    %v2786 = vadd.f32 %v2773, %v2785
    %v2787 = vpop.f32.mrf.mxu0
    %2788 = vdwg.mxu0
    %2789 = vmatpush.bf16.msra.mxu0 %v2346
    %2790 = vmatpush.bf16.msra.mxu0 %v2341
    %2791 = vmatpush.bf16.msra.mxu0 %v2336
    %2792 = vmatpush.bf16.msra.mxu0 %v2331
    %2793 = vmatpush.bf16.msra.mxu0 %v2326
    %2794 = vmatpush.bf16.msra.mxu0 %v2321
    %2795 = vmatpush.bf16.msra.mxu0 %v2316
    %2796 = vmatpush.bf16.msra.mxu0 %v2311
    %2797 = vmatmul.bf16.gmra.mxu0 %v650
    %v2798 = vpop.f32.mrf.mxu0
    %v2799 = vadd.f32 %v2786, %v2798
    %v2800 = vpop.f32.mrf.mxu0
    %2801 = vdwg.mxu0
    %2802 = vmatpush.bf16.msra.mxu0 %v2386
    %2803 = vmatpush.bf16.msra.mxu0 %v2381
    %2804 = vmatpush.bf16.msra.mxu0 %v2376
    %2805 = vmatpush.bf16.msra.mxu0 %v2371
    %2806 = vmatpush.bf16.msra.mxu0 %v2366
    %2807 = vmatpush.bf16.msra.mxu0 %v2361
    %2808 = vmatpush.bf16.msra.mxu0 %v2356
    %2809 = vmatpush.bf16.msra.mxu0 %v2351
    %2810 = vmatmul.bf16.gmra.mxu0 %v651
    %v2811 = vpop.f32.mrf.mxu0
    %v2812 = vadd.f32 %v2799, %v2811
    %v2813 = vpop.f32.mrf.mxu0
    %2814 = vdwg.mxu0
    %2815 = vmatpush.bf16.msra.mxu0 %v2107
    %2816 = vmatpush.bf16.msra.mxu0 %v2102
    %2817 = vmatpush.bf16.msra.mxu0 %v2097
    %2818 = vmatpush.bf16.msra.mxu0 %v2092
    %2819 = vmatpush.bf16.msra.mxu0 %v2087
    %2820 = vmatpush.bf16.msra.mxu0 %v2082
    %2821 = vmatpush.bf16.msra.mxu0 %v2077
    %2822 = vmatpush.bf16.msra.mxu0 %v2072
    %2823 = vmatmul.bf16.gmra.mxu0 %v644
    %v2824 = vpop.f32.mrf.mxu0
    %v2825 = vadd.f32 %v1038, %v2824
    %v2826 = vpop.f32.mrf.mxu0
    %2827 = vdwg.mxu0
    %2828 = vmatpush.bf16.msra.mxu0 %v2147
    %2829 = vmatpush.bf16.msra.mxu0 %v2142
    %2830 = vmatpush.bf16.msra.mxu0 %v2137
    %2831 = vmatpush.bf16.msra.mxu0 %v2132
    %2832 = vmatpush.bf16.msra.mxu0 %v2127
    %2833 = vmatpush.bf16.msra.mxu0 %v2122
    %2834 = vmatpush.bf16.msra.mxu0 %v2117
    %2835 = vmatpush.bf16.msra.mxu0 %v2112
    %2836 = vmatmul.bf16.gmra.mxu0 %v645
    %v2837 = vpop.f32.mrf.mxu0
    %v2838 = vadd.f32 %v2825, %v2837
    %v2839 = vpop.f32.mrf.mxu0
    %2840 = vdwg.mxu0
    %2841 = vmatpush.bf16.msra.mxu0 %v2187
    %2842 = vmatpush.bf16.msra.mxu0 %v2182
    %2843 = vmatpush.bf16.msra.mxu0 %v2177
    %2844 = vmatpush.bf16.msra.mxu0 %v2172
    %2845 = vmatpush.bf16.msra.mxu0 %v2167
    %2846 = vmatpush.bf16.msra.mxu0 %v2162
    %2847 = vmatpush.bf16.msra.mxu0 %v2157
    %2848 = vmatpush.bf16.msra.mxu0 %v2152
    %2849 = vmatmul.bf16.gmra.mxu0 %v646
    %v2850 = vpop.f32.mrf.mxu0
    %v2851 = vadd.f32 %v2838, %v2850
    %v2852 = vpop.f32.mrf.mxu0
    %2853 = vdwg.mxu0
    %2854 = vmatpush.bf16.msra.mxu0 %v2227
    %2855 = vmatpush.bf16.msra.mxu0 %v2222
    %2856 = vmatpush.bf16.msra.mxu0 %v2217
    %2857 = vmatpush.bf16.msra.mxu0 %v2212
    %2858 = vmatpush.bf16.msra.mxu0 %v2207
    %2859 = vmatpush.bf16.msra.mxu0 %v2202
    %2860 = vmatpush.bf16.msra.mxu0 %v2197
    %2861 = vmatpush.bf16.msra.mxu0 %v2192
    %2862 = vmatmul.bf16.gmra.mxu0 %v647
    %v2863 = vpop.f32.mrf.mxu0
    %v2864 = vadd.f32 %v2851, %v2863
    %v2865 = vpop.f32.mrf.mxu0
    %2866 = vdwg.mxu0
    %2867 = vmatpush.bf16.msra.mxu0 %v2267
    %2868 = vmatpush.bf16.msra.mxu0 %v2262
    %2869 = vmatpush.bf16.msra.mxu0 %v2257
    %2870 = vmatpush.bf16.msra.mxu0 %v2252
    %2871 = vmatpush.bf16.msra.mxu0 %v2247
    %2872 = vmatpush.bf16.msra.mxu0 %v2242
    %2873 = vmatpush.bf16.msra.mxu0 %v2237
    %2874 = vmatpush.bf16.msra.mxu0 %v2232
    %2875 = vmatmul.bf16.gmra.mxu0 %v648
    %v2876 = vpop.f32.mrf.mxu0
    %v2877 = vadd.f32 %v2864, %v2876
    %v2878 = vpop.f32.mrf.mxu0
    %2879 = vdwg.mxu0
    %2880 = vmatpush.bf16.msra.mxu0 %v2307
    %2881 = vmatpush.bf16.msra.mxu0 %v2302
    %2882 = vmatpush.bf16.msra.mxu0 %v2297
    %2883 = vmatpush.bf16.msra.mxu0 %v2292
    %2884 = vmatpush.bf16.msra.mxu0 %v2287
    %2885 = vmatpush.bf16.msra.mxu0 %v2282
    %2886 = vmatpush.bf16.msra.mxu0 %v2277
    %2887 = vmatpush.bf16.msra.mxu0 %v2272
    %2888 = vmatmul.bf16.gmra.mxu0 %v649
    %v2889 = vpop.f32.mrf.mxu0
    %v2890 = vadd.f32 %v2877, %v2889
    %v2891 = vpop.f32.mrf.mxu0
    %2892 = vdwg.mxu0
    %2893 = vmatpush.bf16.msra.mxu0 %v2347
    %2894 = vmatpush.bf16.msra.mxu0 %v2342
    %2895 = vmatpush.bf16.msra.mxu0 %v2337
    %2896 = vmatpush.bf16.msra.mxu0 %v2332
    %2897 = vmatpush.bf16.msra.mxu0 %v2327
    %2898 = vmatpush.bf16.msra.mxu0 %v2322
    %2899 = vmatpush.bf16.msra.mxu0 %v2317
    %2900 = vmatpush.bf16.msra.mxu0 %v2312
    %2901 = vmatmul.bf16.gmra.mxu0 %v650
    %v2902 = vpop.f32.mrf.mxu0
    %v2903 = vadd.f32 %v2890, %v2902
    %v2904 = vpop.f32.mrf.mxu0
    %2905 = vdwg.mxu0
    %2906 = vmatpush.bf16.msra.mxu0 %v2387
    %2907 = vmatpush.bf16.msra.mxu0 %v2382
    %2908 = vmatpush.bf16.msra.mxu0 %v2377
    %2909 = vmatpush.bf16.msra.mxu0 %v2372
    %2910 = vmatpush.bf16.msra.mxu0 %v2367
    %2911 = vmatpush.bf16.msra.mxu0 %v2362
    %2912 = vmatpush.bf16.msra.mxu0 %v2357
    %2913 = vmatpush.bf16.msra.mxu0 %v2352
    %2914 = vmatmul.bf16.gmra.mxu0 %v651
    %v2915 = vpop.f32.mrf.mxu0
    %v2916 = vadd.f32 %v2903, %v2915
    %v2917 = vpop.f32.mrf.mxu0
    %2918 = vdwg.mxu0
    %2919 = vmatpush.bf16.msra.mxu0 %v2108
    %2920 = vmatpush.bf16.msra.mxu0 %v2103
    %2921 = vmatpush.bf16.msra.mxu0 %v2098
    %2922 = vmatpush.bf16.msra.mxu0 %v2093
    %2923 = vmatpush.bf16.msra.mxu0 %v2088
    %2924 = vmatpush.bf16.msra.mxu0 %v2083
    %2925 = vmatpush.bf16.msra.mxu0 %v2078
    %2926 = vmatpush.bf16.msra.mxu0 %v2073
    %2927 = vmatmul.bf16.gmra.mxu0 %v644
    %v2928 = vpop.f32.mrf.mxu0
    %v2929 = vadd.f32 %v1039, %v2928
    %v2930 = vpop.f32.mrf.mxu0
    %2931 = vdwg.mxu0
    %2932 = vmatpush.bf16.msra.mxu0 %v2148
    %2933 = vmatpush.bf16.msra.mxu0 %v2143
    %2934 = vmatpush.bf16.msra.mxu0 %v2138
    %2935 = vmatpush.bf16.msra.mxu0 %v2133
    %2936 = vmatpush.bf16.msra.mxu0 %v2128
    %2937 = vmatpush.bf16.msra.mxu0 %v2123
    %2938 = vmatpush.bf16.msra.mxu0 %v2118
    %2939 = vmatpush.bf16.msra.mxu0 %v2113
    %2940 = vmatmul.bf16.gmra.mxu0 %v645
    %v2941 = vpop.f32.mrf.mxu0
    %v2942 = vadd.f32 %v2929, %v2941
    %v2943 = vpop.f32.mrf.mxu0
    %2944 = vdwg.mxu0
    %2945 = vmatpush.bf16.msra.mxu0 %v2188
    %2946 = vmatpush.bf16.msra.mxu0 %v2183
    %2947 = vmatpush.bf16.msra.mxu0 %v2178
    %2948 = vmatpush.bf16.msra.mxu0 %v2173
    %2949 = vmatpush.bf16.msra.mxu0 %v2168
    %2950 = vmatpush.bf16.msra.mxu0 %v2163
    %2951 = vmatpush.bf16.msra.mxu0 %v2158
    %2952 = vmatpush.bf16.msra.mxu0 %v2153
    %2953 = vmatmul.bf16.gmra.mxu0 %v646
    %v2954 = vpop.f32.mrf.mxu0
    %v2955 = vadd.f32 %v2942, %v2954
    %v2956 = vpop.f32.mrf.mxu0
    %2957 = vdwg.mxu0
    %2958 = vmatpush.bf16.msra.mxu0 %v2228
    %2959 = vmatpush.bf16.msra.mxu0 %v2223
    %2960 = vmatpush.bf16.msra.mxu0 %v2218
    %2961 = vmatpush.bf16.msra.mxu0 %v2213
    %2962 = vmatpush.bf16.msra.mxu0 %v2208
    %2963 = vmatpush.bf16.msra.mxu0 %v2203
    %2964 = vmatpush.bf16.msra.mxu0 %v2198
    %2965 = vmatpush.bf16.msra.mxu0 %v2193
    %2966 = vmatmul.bf16.gmra.mxu0 %v647
    %v2967 = vpop.f32.mrf.mxu0
    %v2968 = vadd.f32 %v2955, %v2967
    %v2969 = vpop.f32.mrf.mxu0
    %2970 = vdwg.mxu0
    %2971 = vmatpush.bf16.msra.mxu0 %v2268
    %2972 = vmatpush.bf16.msra.mxu0 %v2263
    %2973 = vmatpush.bf16.msra.mxu0 %v2258
    %2974 = vmatpush.bf16.msra.mxu0 %v2253
    %2975 = vmatpush.bf16.msra.mxu0 %v2248
    %2976 = vmatpush.bf16.msra.mxu0 %v2243
    %2977 = vmatpush.bf16.msra.mxu0 %v2238
    %2978 = vmatpush.bf16.msra.mxu0 %v2233
    %2979 = vmatmul.bf16.gmra.mxu0 %v648
    %v2980 = vpop.f32.mrf.mxu0
    %v2981 = vadd.f32 %v2968, %v2980
    %v2982 = vpop.f32.mrf.mxu0
    %2983 = vdwg.mxu0
    %2984 = vmatpush.bf16.msra.mxu0 %v2308
    %2985 = vmatpush.bf16.msra.mxu0 %v2303
    %2986 = vmatpush.bf16.msra.mxu0 %v2298
    %2987 = vmatpush.bf16.msra.mxu0 %v2293
    %2988 = vmatpush.bf16.msra.mxu0 %v2288
    %2989 = vmatpush.bf16.msra.mxu0 %v2283
    %2990 = vmatpush.bf16.msra.mxu0 %v2278
    %2991 = vmatpush.bf16.msra.mxu0 %v2273
    %2992 = vmatmul.bf16.gmra.mxu0 %v649
    %v2993 = vpop.f32.mrf.mxu0
    %v2994 = vadd.f32 %v2981, %v2993
    %v2995 = vpop.f32.mrf.mxu0
    %2996 = vdwg.mxu0
    %2997 = vmatpush.bf16.msra.mxu0 %v2348
    %2998 = vmatpush.bf16.msra.mxu0 %v2343
    %2999 = vmatpush.bf16.msra.mxu0 %v2338
    %3000 = vmatpush.bf16.msra.mxu0 %v2333
    %3001 = vmatpush.bf16.msra.mxu0 %v2328
    %3002 = vmatpush.bf16.msra.mxu0 %v2323
    %3003 = vmatpush.bf16.msra.mxu0 %v2318
    %3004 = vmatpush.bf16.msra.mxu0 %v2313
    %3005 = vmatmul.bf16.gmra.mxu0 %v650
    %v3006 = vpop.f32.mrf.mxu0
    %v3007 = vadd.f32 %v2994, %v3006
    %v3008 = vpop.f32.mrf.mxu0
    %3009 = vdwg.mxu0
    %3010 = vmatpush.bf16.msra.mxu0 %v2388
    %3011 = vmatpush.bf16.msra.mxu0 %v2383
    %3012 = vmatpush.bf16.msra.mxu0 %v2378
    %3013 = vmatpush.bf16.msra.mxu0 %v2373
    %3014 = vmatpush.bf16.msra.mxu0 %v2368
    %3015 = vmatpush.bf16.msra.mxu0 %v2363
    %3016 = vmatpush.bf16.msra.mxu0 %v2358
    %3017 = vmatpush.bf16.msra.mxu0 %v2353
    %3018 = vmatmul.bf16.gmra.mxu0 %v651
    %v3019 = vpop.f32.mrf.mxu0
    %v3020 = vadd.f32 %v3007, %v3019
    %v3021 = vpop.f32.mrf.mxu0
    %3022 = vdwg.mxu0
    %3023 = vmatpush.bf16.msra.mxu0 %v2109
    %3024 = vmatpush.bf16.msra.mxu0 %v2104
    %3025 = vmatpush.bf16.msra.mxu0 %v2099
    %3026 = vmatpush.bf16.msra.mxu0 %v2094
    %3027 = vmatpush.bf16.msra.mxu0 %v2089
    %3028 = vmatpush.bf16.msra.mxu0 %v2084
    %3029 = vmatpush.bf16.msra.mxu0 %v2079
    %3030 = vmatpush.bf16.msra.mxu0 %v2074
    %3031 = vmatmul.bf16.gmra.mxu0 %v644
    %v3032 = vpop.f32.mrf.mxu0
    %v3033 = vadd.f32 %v1040, %v3032
    %v3034 = vpop.f32.mrf.mxu0
    %3035 = vdwg.mxu0
    %3036 = vmatpush.bf16.msra.mxu0 %v2149
    %3037 = vmatpush.bf16.msra.mxu0 %v2144
    %3038 = vmatpush.bf16.msra.mxu0 %v2139
    %3039 = vmatpush.bf16.msra.mxu0 %v2134
    %3040 = vmatpush.bf16.msra.mxu0 %v2129
    %3041 = vmatpush.bf16.msra.mxu0 %v2124
    %3042 = vmatpush.bf16.msra.mxu0 %v2119
    %3043 = vmatpush.bf16.msra.mxu0 %v2114
    %3044 = vmatmul.bf16.gmra.mxu0 %v645
    %v3045 = vpop.f32.mrf.mxu0
    %v3046 = vadd.f32 %v3033, %v3045
    %v3047 = vpop.f32.mrf.mxu0
    %3048 = vdwg.mxu0
    %3049 = vmatpush.bf16.msra.mxu0 %v2189
    %3050 = vmatpush.bf16.msra.mxu0 %v2184
    %3051 = vmatpush.bf16.msra.mxu0 %v2179
    %3052 = vmatpush.bf16.msra.mxu0 %v2174
    %3053 = vmatpush.bf16.msra.mxu0 %v2169
    %3054 = vmatpush.bf16.msra.mxu0 %v2164
    %3055 = vmatpush.bf16.msra.mxu0 %v2159
    %3056 = vmatpush.bf16.msra.mxu0 %v2154
    %3057 = vmatmul.bf16.gmra.mxu0 %v646
    %v3058 = vpop.f32.mrf.mxu0
    %v3059 = vadd.f32 %v3046, %v3058
    %v3060 = vpop.f32.mrf.mxu0
    %3061 = vdwg.mxu0
    %3062 = vmatpush.bf16.msra.mxu0 %v2229
    %3063 = vmatpush.bf16.msra.mxu0 %v2224
    %3064 = vmatpush.bf16.msra.mxu0 %v2219
    %3065 = vmatpush.bf16.msra.mxu0 %v2214
    %3066 = vmatpush.bf16.msra.mxu0 %v2209
    %3067 = vmatpush.bf16.msra.mxu0 %v2204
    %3068 = vmatpush.bf16.msra.mxu0 %v2199
    %3069 = vmatpush.bf16.msra.mxu0 %v2194
    %3070 = vmatmul.bf16.gmra.mxu0 %v647
    %v3071 = vpop.f32.mrf.mxu0
    %v3072 = vadd.f32 %v3059, %v3071
    %v3073 = vpop.f32.mrf.mxu0
    %3074 = vdwg.mxu0
    %3075 = vmatpush.bf16.msra.mxu0 %v2269
    %3076 = vmatpush.bf16.msra.mxu0 %v2264
    %3077 = vmatpush.bf16.msra.mxu0 %v2259
    %3078 = vmatpush.bf16.msra.mxu0 %v2254
    %3079 = vmatpush.bf16.msra.mxu0 %v2249
    %3080 = vmatpush.bf16.msra.mxu0 %v2244
    %3081 = vmatpush.bf16.msra.mxu0 %v2239
    %3082 = vmatpush.bf16.msra.mxu0 %v2234
    %3083 = vmatmul.bf16.gmra.mxu0 %v648
    %v3084 = vpop.f32.mrf.mxu0
    %v3085 = vadd.f32 %v3072, %v3084
    %v3086 = vpop.f32.mrf.mxu0
    %3087 = vdwg.mxu0
    %3088 = vmatpush.bf16.msra.mxu0 %v2309
    %3089 = vmatpush.bf16.msra.mxu0 %v2304
    %3090 = vmatpush.bf16.msra.mxu0 %v2299
    %3091 = vmatpush.bf16.msra.mxu0 %v2294
    %3092 = vmatpush.bf16.msra.mxu0 %v2289
    %3093 = vmatpush.bf16.msra.mxu0 %v2284
    %3094 = vmatpush.bf16.msra.mxu0 %v2279
    %3095 = vmatpush.bf16.msra.mxu0 %v2274
    %3096 = vmatmul.bf16.gmra.mxu0 %v649
    %v3097 = vpop.f32.mrf.mxu0
    %v3098 = vadd.f32 %v3085, %v3097
    %v3099 = vpop.f32.mrf.mxu0
    %3100 = vdwg.mxu0
    %3101 = vmatpush.bf16.msra.mxu0 %v2349
    %3102 = vmatpush.bf16.msra.mxu0 %v2344
    %3103 = vmatpush.bf16.msra.mxu0 %v2339
    %3104 = vmatpush.bf16.msra.mxu0 %v2334
    %3105 = vmatpush.bf16.msra.mxu0 %v2329
    %3106 = vmatpush.bf16.msra.mxu0 %v2324
    %3107 = vmatpush.bf16.msra.mxu0 %v2319
    %3108 = vmatpush.bf16.msra.mxu0 %v2314
    %3109 = vmatmul.bf16.gmra.mxu0 %v650
    %v3110 = vpop.f32.mrf.mxu0
    %v3111 = vadd.f32 %v3098, %v3110
    %v3112 = vpop.f32.mrf.mxu0
    %3113 = vdwg.mxu0
    %3114 = vmatpush.bf16.msra.mxu0 %v2389
    %3115 = vmatpush.bf16.msra.mxu0 %v2384
    %3116 = vmatpush.bf16.msra.mxu0 %v2379
    %3117 = vmatpush.bf16.msra.mxu0 %v2374
    %3118 = vmatpush.bf16.msra.mxu0 %v2369
    %3119 = vmatpush.bf16.msra.mxu0 %v2364
    %3120 = vmatpush.bf16.msra.mxu0 %v2359
    %3121 = vmatpush.bf16.msra.mxu0 %v2354
    %3122 = vmatmul.bf16.gmra.mxu0 %v651
    %v3123 = vpop.f32.mrf.mxu0
    %v3124 = vadd.f32 %v3111, %v3123
    %v3125 = vpop.f32.mrf.mxu0
    %3126 = vdwg.mxu0
    %3127 = vmatpush.bf16.msra.mxu0 %v2110
    %3128 = vmatpush.bf16.msra.mxu0 %v2105
    %3129 = vmatpush.bf16.msra.mxu0 %v2100
    %3130 = vmatpush.bf16.msra.mxu0 %v2095
    %3131 = vmatpush.bf16.msra.mxu0 %v2090
    %3132 = vmatpush.bf16.msra.mxu0 %v2085
    %3133 = vmatpush.bf16.msra.mxu0 %v2080
    %3134 = vmatpush.bf16.msra.mxu0 %v2075
    %3135 = vmatmul.bf16.gmra.mxu0 %v644
    %v3136 = vpop.f32.mrf.mxu0
    %v3137 = vadd.f32 %v1041, %v3136
    %v3138 = vpop.f32.mrf.mxu0
    %3139 = vdwg.mxu0
    %3140 = vmatpush.bf16.msra.mxu0 %v2150
    %3141 = vmatpush.bf16.msra.mxu0 %v2145
    %3142 = vmatpush.bf16.msra.mxu0 %v2140
    %3143 = vmatpush.bf16.msra.mxu0 %v2135
    %3144 = vmatpush.bf16.msra.mxu0 %v2130
    %3145 = vmatpush.bf16.msra.mxu0 %v2125
    %3146 = vmatpush.bf16.msra.mxu0 %v2120
    %3147 = vmatpush.bf16.msra.mxu0 %v2115
    %3148 = vmatmul.bf16.gmra.mxu0 %v645
    %v3149 = vpop.f32.mrf.mxu0
    %v3150 = vadd.f32 %v3137, %v3149
    %v3151 = vpop.f32.mrf.mxu0
    %3152 = vdwg.mxu0
    %3153 = vmatpush.bf16.msra.mxu0 %v2190
    %3154 = vmatpush.bf16.msra.mxu0 %v2185
    %3155 = vmatpush.bf16.msra.mxu0 %v2180
    %3156 = vmatpush.bf16.msra.mxu0 %v2175
    %3157 = vmatpush.bf16.msra.mxu0 %v2170
    %3158 = vmatpush.bf16.msra.mxu0 %v2165
    %3159 = vmatpush.bf16.msra.mxu0 %v2160
    %3160 = vmatpush.bf16.msra.mxu0 %v2155
    %3161 = vmatmul.bf16.gmra.mxu0 %v646
    %v3162 = vpop.f32.mrf.mxu0
    %v3163 = vadd.f32 %v3150, %v3162
    %v3164 = vpop.f32.mrf.mxu0
    %3165 = vdwg.mxu0
    %3166 = vmatpush.bf16.msra.mxu0 %v2230
    %3167 = vmatpush.bf16.msra.mxu0 %v2225
    %3168 = vmatpush.bf16.msra.mxu0 %v2220
    %3169 = vmatpush.bf16.msra.mxu0 %v2215
    %3170 = vmatpush.bf16.msra.mxu0 %v2210
    %3171 = vmatpush.bf16.msra.mxu0 %v2205
    %3172 = vmatpush.bf16.msra.mxu0 %v2200
    %3173 = vmatpush.bf16.msra.mxu0 %v2195
    %3174 = vmatmul.bf16.gmra.mxu0 %v647
    %v3175 = vpop.f32.mrf.mxu0
    %v3176 = vadd.f32 %v3163, %v3175
    %v3177 = vpop.f32.mrf.mxu0
    %3178 = vdwg.mxu0
    %3179 = vmatpush.bf16.msra.mxu0 %v2270
    %3180 = vmatpush.bf16.msra.mxu0 %v2265
    %3181 = vmatpush.bf16.msra.mxu0 %v2260
    %3182 = vmatpush.bf16.msra.mxu0 %v2255
    %3183 = vmatpush.bf16.msra.mxu0 %v2250
    %3184 = vmatpush.bf16.msra.mxu0 %v2245
    %3185 = vmatpush.bf16.msra.mxu0 %v2240
    %3186 = vmatpush.bf16.msra.mxu0 %v2235
    %3187 = vmatmul.bf16.gmra.mxu0 %v648
    %v3188 = vpop.f32.mrf.mxu0
    %v3189 = vadd.f32 %v3176, %v3188
    %v3190 = vpop.f32.mrf.mxu0
    %3191 = vdwg.mxu0
    %3192 = vmatpush.bf16.msra.mxu0 %v2310
    %3193 = vmatpush.bf16.msra.mxu0 %v2305
    %3194 = vmatpush.bf16.msra.mxu0 %v2300
    %3195 = vmatpush.bf16.msra.mxu0 %v2295
    %3196 = vmatpush.bf16.msra.mxu0 %v2290
    %3197 = vmatpush.bf16.msra.mxu0 %v2285
    %3198 = vmatpush.bf16.msra.mxu0 %v2280
    %3199 = vmatpush.bf16.msra.mxu0 %v2275
    %3200 = vmatmul.bf16.gmra.mxu0 %v649
    %v3201 = vpop.f32.mrf.mxu0
    %v3202 = vadd.f32 %v3189, %v3201
    %v3203 = vpop.f32.mrf.mxu0
    %3204 = vdwg.mxu0
    %3205 = vmatpush.bf16.msra.mxu0 %v2350
    %3206 = vmatpush.bf16.msra.mxu0 %v2345
    %3207 = vmatpush.bf16.msra.mxu0 %v2340
    %3208 = vmatpush.bf16.msra.mxu0 %v2335
    %3209 = vmatpush.bf16.msra.mxu0 %v2330
    %3210 = vmatpush.bf16.msra.mxu0 %v2325
    %3211 = vmatpush.bf16.msra.mxu0 %v2320
    %3212 = vmatpush.bf16.msra.mxu0 %v2315
    %3213 = vmatmul.bf16.gmra.mxu0 %v650
    %v3214 = vpop.f32.mrf.mxu0
    %v3215 = vadd.f32 %v3202, %v3214
    %v3216 = vpop.f32.mrf.mxu0
    %3217 = vdwg.mxu0
    %3218 = vmatpush.bf16.msra.mxu0 %v2390
    %3219 = vmatpush.bf16.msra.mxu0 %v2385
    %3220 = vmatpush.bf16.msra.mxu0 %v2380
    %3221 = vmatpush.bf16.msra.mxu0 %v2375
    %3222 = vmatpush.bf16.msra.mxu0 %v2370
    %3223 = vmatpush.bf16.msra.mxu0 %v2365
    %3224 = vmatpush.bf16.msra.mxu0 %v2360
    %3225 = vmatpush.bf16.msra.mxu0 %v2355
    %3226 = vmatmul.bf16.gmra.mxu0 %v651
    %v3227 = vpop.f32.mrf.mxu0
    %v3228 = vadd.f32 %v3215, %v3227
    %v3229 = vpop.f32.mrf.mxu0
    %3230 = vdwg.mxu0
    %v3231 = vadd.f32 %v2812, %v2916
    %v3232 = vadd.f32 %v3231, %v3020
    %v3233 = vadd.f32 %v3232, %v3124
    %v3234 = vmul.f32 %v3233, 0.25
    %v3235 = vlaneseq
    %v3236 = vand.u32 %v3235, 127
    %vm3237 = vcmp.lt.s32.totalorder %v3236, 51
    %v3238 = vadd.f32 %v3228, %v2812
    %v3239 = vsub.f32 %v3238, %v3234
    %v3240 = vsel %vm3237, %v3239, -1e+30
    %3241 = vmax.xlane.f32.xlu0 %v3240
    %v3242 = vpop.xlane.xlu0 %3241
    %v3243 = vsub.f32 %v3240, %v3242
    %v3244 = vmul.f32 %v3243, 1.442695
    %v3245 = vpow.pop %v3244
    %3246 = vadd.xlane.f32.xlu0 %v3245
    %v3247 = vpop.xlane.xlu0 %3246
    %v3248 = vrcp.pop %v3247
    %v3249 = vmul.f32 %v3247, %v3248
    %v3250 = vsub.f32 1.0, %v3249
    %v3251 = vmul.f32 %v3248, %v3250
    %v3252 = vadd.f32 %v3248, %v3251
    %vm3253 = vweird.f32 %v3247
    %vm3254 = vweird.f32 %v3248
    %vm3255 = vmor %vm3253, %vm3254
    %v3256 = vsel %vm3255, %v3248, %v3252
    %v3257 = vand.u32 2147483647, %v3247
    %vm3258 = vcmp.eq.f32.partialorder %v3257, 8.507059e+37
    %v3259 = vand.u32 %v3247, 2147483648
    %v3260 = vor.u32 1.1754944e-38, %v3259
    %v3261 = vsel %vm3258, %v3260, %v3256
    %v3262 = vmul.f32 %v3245, %v3261
    %v3264 = vrot.slane %v3262, 1
    %v3265 = vrot.slane %v3262, 2
    %v3266 = vrot.slane %v3262, 3
    %v3267 = vrot.slane %v3262, 4
    %v3268 = vrot.slane %v3262, 5
    %v3269 = vrot.slane %v3262, 6
    %v3270 = vrot.slane %v3262, 7
    %3278 = vst [vmem:[#allocation11] sm:$0x1] %v3262
    %3279 = vst [vmem:[#allocation11 + $0x4] sm:$0x1] %v3264
    %3280 = vst [vmem:[#allocation11 + $0x8] sm:$0x1] %v3265
    %3281 = vst [vmem:[#allocation11 + $0xc] sm:$0x1] %v3266
    %3282 = vst [vmem:[#allocation11 + $0x10] sm:$0x1] %v3267
    %3283 = vst [vmem:[#allocation11 + $0x14] sm:$0x1] %v3268
    %3284 = vst [vmem:[#allocation11 + $0x18] sm:$0x1] %v3269
    %3285 = vst [vmem:[#allocation11 + $0x1c] sm:$0x1] %v3270
    %v3286 = vadd.f32 %v3228, %v2916
    %v3287 = vsub.f32 %v3286, %v3234
    %v3288 = vsel %vm3237, %v3287, -1e+30
    %3289 = vmax.xlane.f32.xlu0 %v3288
    %v3290 = vpop.xlane.xlu0 %3289
    %v3291 = vsub.f32 %v3288, %v3290
    %v3292 = vmul.f32 %v3291, 1.442695
    %v3293 = vpow.pop %v3292
    %3294 = vadd.xlane.f32.xlu0 %v3293
    %v3295 = vpop.xlane.xlu0 %3294
    %v3296 = vrcp.pop %v3295
    %v3297 = vmul.f32 %v3295, %v3296
    %v3298 = vsub.f32 1.0, %v3297
    %v3299 = vmul.f32 %v3296, %v3298
    %v3300 = vadd.f32 %v3296, %v3299
    %vm3301 = vweird.f32 %v3295
    %vm3302 = vweird.f32 %v3296
    %vm3303 = vmor %vm3301, %vm3302
    %v3304 = vsel %vm3303, %v3296, %v3300
    %v3305 = vand.u32 2147483647, %v3295
    %vm3306 = vcmp.eq.f32.partialorder %v3305, 8.507059e+37
    %v3307 = vand.u32 %v3295, 2147483648
    %v3308 = vor.u32 1.1754944e-38, %v3307
    %v3309 = vsel %vm3306, %v3308, %v3304
    %v3310 = vmul.f32 %v3293, %v3309
    %v3312 = vrot.slane %v3310, 1
    %v3313 = vrot.slane %v3310, 2
    %v3314 = vrot.slane %v3310, 3
    %v3315 = vrot.slane %v3310, 4
    %v3316 = vrot.slane %v3310, 5
    %v3317 = vrot.slane %v3310, 6
    %v3318 = vrot.slane %v3310, 7
    %3326 = vst [vmem:[#allocation11 + $0x1] sm:$0x1] %v3310
    %3327 = vst [vmem:[#allocation11 + $0x5] sm:$0x1] %v3312
    %3328 = vst [vmem:[#allocation11 + $0x9] sm:$0x1] %v3313
    %3329 = vst [vmem:[#allocation11 + $0xd] sm:$0x1] %v3314
    %3330 = vst [vmem:[#allocation11 + $0x11] sm:$0x1] %v3315
    %3331 = vst [vmem:[#allocation11 + $0x15] sm:$0x1] %v3316
    %3332 = vst [vmem:[#allocation11 + $0x19] sm:$0x1] %v3317
    %3333 = vst [vmem:[#allocation11 + $0x1d] sm:$0x1] %v3318
    %v3334 = vadd.f32 %v3228, %v3020
    %v3335 = vsub.f32 %v3334, %v3234
    %v3336 = vsel %vm3237, %v3335, -1e+30
    %3337 = vmax.xlane.f32.xlu0 %v3336
    %v3338 = vpop.xlane.xlu0 %3337
    %v3339 = vsub.f32 %v3336, %v3338
    %v3340 = vmul.f32 %v3339, 1.442695
    %v3341 = vpow.pop %v3340
    %3342 = vadd.xlane.f32.xlu0 %v3341
    %v3343 = vpop.xlane.xlu0 %3342
    %v3344 = vrcp.pop %v3343
    %v3345 = vmul.f32 %v3343, %v3344
    %v3346 = vsub.f32 1.0, %v3345
    %v3347 = vmul.f32 %v3344, %v3346
    %v3348 = vadd.f32 %v3344, %v3347
    %vm3349 = vweird.f32 %v3343
    %vm3350 = vweird.f32 %v3344
    %vm3351 = vmor %vm3349, %vm3350
    %v3352 = vsel %vm3351, %v3344, %v3348
    %v3353 = vand.u32 2147483647, %v3343
    %vm3354 = vcmp.eq.f32.partialorder %v3353, 8.507059e+37
    %v3355 = vand.u32 %v3343, 2147483648
    %v3356 = vor.u32 1.1754944e-38, %v3355
    %v3357 = vsel %vm3354, %v3356, %v3352
    %v3358 = vmul.f32 %v3341, %v3357
    %v3360 = vrot.slane %v3358, 1
    %v3361 = vrot.slane %v3358, 2
    %v3362 = vrot.slane %v3358, 3
    %v3363 = vrot.slane %v3358, 4
    %v3364 = vrot.slane %v3358, 5
    %v3365 = vrot.slane %v3358, 6
    %v3366 = vrot.slane %v3358, 7
    %3374 = vst [vmem:[#allocation11 + $0x2] sm:$0x1] %v3358
    %3375 = vst [vmem:[#allocation11 + $0x6] sm:$0x1] %v3360
    %3376 = vst [vmem:[#allocation11 + $0xa] sm:$0x1] %v3361
    %3377 = vst [vmem:[#allocation11 + $0xe] sm:$0x1] %v3362
    %3378 = vst [vmem:[#allocation11 + $0x12] sm:$0x1] %v3363
    %3379 = vst [vmem:[#allocation11 + $0x16] sm:$0x1] %v3364
    %3380 = vst [vmem:[#allocation11 + $0x1a] sm:$0x1] %v3365
    %3381 = vst [vmem:[#allocation11 + $0x1e] sm:$0x1] %v3366
    %v3382 = vadd.f32 %v3228, %v3124
    %v3383 = vsub.f32 %v3382, %v3234
    %v3384 = vsel %vm3237, %v3383, -1e+30
    %3385 = vmax.xlane.f32.xlu0 %v3384
    %v3386 = vpop.xlane.xlu0 %3385
    %v3387 = vsub.f32 %v3384, %v3386
    %v3388 = vmul.f32 %v3387, 1.442695
    %v3389 = vpow.pop %v3388
    %3390 = vadd.xlane.f32.xlu0 %v3389
    %v3391 = vpop.xlane.xlu0 %3390
    %v3392 = vrcp.pop %v3391
    %v3393 = vmul.f32 %v3391, %v3392
    %v3394 = vsub.f32 1.0, %v3393
    %v3395 = vmul.f32 %v3392, %v3394
    %v3396 = vadd.f32 %v3392, %v3395
    %vm3397 = vweird.f32 %v3391
    %vm3398 = vweird.f32 %v3392
    %vm3399 = vmor %vm3397, %vm3398
    %v3400 = vsel %vm3399, %v3392, %v3396
    %v3401 = vand.u32 2147483647, %v3391
    %vm3402 = vcmp.eq.f32.partialorder %v3401, 8.507059e+37
    %v3403 = vand.u32 %v3391, 2147483648
    %v3404 = vor.u32 1.1754944e-38, %v3403
    %v3405 = vsel %vm3402, %v3404, %v3400
    %v3406 = vmul.f32 %v3389, %v3405
    %v3408 = vrot.slane %v3406, 1
    %v3409 = vrot.slane %v3406, 2
    %v3410 = vrot.slane %v3406, 3
    %v3411 = vrot.slane %v3406, 4
    %v3412 = vrot.slane %v3406, 5
    %v3413 = vrot.slane %v3406, 6
    %v3414 = vrot.slane %v3406, 7
    %3422 = vst [vmem:[#allocation11 + $0x3] sm:$0x1] %v3406
    %3423 = vst [vmem:[#allocation11 + $0x7] sm:$0x1] %v3408
    %3424 = vst [vmem:[#allocation11 + $0xb] sm:$0x1] %v3409
    %3425 = vst [vmem:[#allocation11 + $0xf] sm:$0x1] %v3410
    %3426 = vst [vmem:[#allocation11 + $0x13] sm:$0x1] %v3411
    %3427 = vst [vmem:[#allocation11 + $0x17] sm:$0x1] %v3412
    %3428 = vst [vmem:[#allocation11 + $0x1b] sm:$0x1] %v3413
    %3429 = vst [vmem:[#allocation11 + $0x1f] sm:$0x1] %v3414
    // Predicated region
    $region42: #{categorical_dueling_dqn_forward.1} parent=1 // pred_check
      _
    $region43: #{categorical_dueling_dqn_forward.1} parent=1 // pred_check_branch
      %3431 = sbr.rel (0) target = $region45
    $region44: #{categorical_dueling_dqn_forward.1} parent=1 // pred_region
      %3433 = vsyncadd [#allocation4], 0
      %s3434 = sshll.u32 [#allocation11], 4
      %s3435 = int_to_ptr.vmem [resolvable:$true] %s3434
      %s3436 = sshll.u32 %s5, 4
      %s3437 = int_to_ptr.hbm [resolvable:$true] %s3436
      %3442 = dma.vmem_to_hbm [thread:$0]  %s3435, 512, %s3437, [#allocation4], 64, 64, 4
    $region45: #{categorical_dueling_dqn_forward.1} parent=1 // pred_fallthru
      _
    // Predicated region
    $region46: #{categorical_dueling_dqn_forward.1} parent=1 // pred_check
      _
    $region47: #{categorical_dueling_dqn_forward.1} parent=1 // pred_check_branch
      %3444 = sbr.rel (0) target = $region49
    $region48: #{categorical_dueling_dqn_forward.1} parent=1 // pred_region
      %3446 = dma.done [#allocation4], 512
    $region49: #{categorical_dueling_dqn_forward.1} parent=1 // pred_fallthru
      _
    %3447 = vsyncpa [#allocation3], 1
    %3448 = vsyncpa [#allocation6], 1
    %3449 = vsyncpa [#allocation9], 1
    %3450 = vsyncpa [#allocation4], 1

</llo_original>
